<compile_context>
chip_gen: v6e
topology: v6e:2x2x1
jax: 0.10.0
libtpu: 0.0.40
codegen_flags: <defaults>
</compile_context>

<pallas_src>
import functools

import jax
import jax.numpy as jnp
from jax import lax
from jax.experimental import pallas as pl
from jax.experimental.pallas import tpu as pltpu


def rnn_fc_kernel(ids_ref,      # (T*BP, 1) int32 token ids, row index = t*BP + b
                  embproj_ref,  # (VP, H)   f32  precomputed emb @ wih1 + b1 (rows >= V are 0)
                  wslab_ref,    # (H, 3H+CP) bf16 packed [whh1 | wih2 | whh2 | wfc_pad]
                  bslab_ref,    # (1, H+CP)  f32  packed [b2 | bfc_pad]
                  out_ref):     # (BP, CP)   f32  padded logits of the last timestep
    TBP = ids_ref.shape[0]
    BP = out_ref.shape[0]
    T = TBP // BP
    VP = embproj_ref.shape[0]
    H = embproj_ref.shape[1]
    CP = out_ref.shape[1]

    # ---- Fused embedding gather + layer-0 input projection (off the serial chain).
    # xproj[t*BP+b] = emb_proj[id[t,b]]  (bias b1 already folded into emb_proj).
    onehot = (lax.broadcasted_iota(jnp.int32, (TBP, VP), 1)
              == ids_ref[...]).astype(jnp.float32)                      # (TBP, VP)
    xproj = jnp.dot(onehot, embproj_ref[...],
                    preferred_element_type=jnp.float32)                 # (TBP, H) f32

    # ---- Static slab views (lane offsets are multiples of 128 -> free slices).
    whh1 = wslab_ref[:, 0:H]
    wih2 = wslab_ref[:, H:2 * H]
    whh2 = wslab_ref[:, 2 * H:3 * H]
    wfc = wslab_ref[:, 3 * H:3 * H + CP]
    b2 = jnp.broadcast_to(bslab_ref[:, 0:H], (BP, H))                   # hoisted broadcast
    bfc = bslab_ref[:, H:H + CP]

    h1 = jnp.zeros((BP, H), jnp.float32)
    h2 = jnp.zeros((BP, H), jnp.float32)

    # ---- Serial recurrence: T is small and fixed -> static unroll.
    # Per step: pre = h2_prev @ whh2 + b2 issued first so it overlaps the h1 update.
    for t in range(T):
        pre = jnp.dot(h2.astype(jnp.bfloat16), whh2,
                      preferred_element_type=jnp.float32) + b2
        h1 = jnp.tanh(xproj[t * BP:(t + 1) * BP, :]
                      + jnp.dot(h1.astype(jnp.bfloat16), whh1,
                                preferred_element_type=jnp.float32))
        h2 = jnp.tanh(jnp.dot(h1.astype(jnp.bfloat16), wih2,
                              preferred_element_type=jnp.float32) + pre)

    # ---- fc on the last timestep; lane-dense (CP multiple of 128) unmasked store.
    out_ref[...] = (jnp.dot(h2.astype(jnp.bfloat16), wfc,
                            preferred_element_type=jnp.float32) + bfc)


def prepare_params(params):
    """One-time, parameter-only prep (run at init, NOT per forward call)."""
    H = params["whh1"].shape[0]
    C = params["wfc"].shape[1]
    CP = 128 * ((C + 127) // 128)
    V = params["embedding"].shape[0]
    VP = 8 * ((V + 7) // 8)

    # Precompute layer-0 input projection of every vocab row; fold bias b1.
    emb_proj = params["embedding"] @ params["wih1"] + params["b1"]       # (V, H) f32
    emb_proj = jnp.zeros((VP, H), jnp.float32).at[:V].set(emb_proj)

    # bf16 MXU-operand weight slab; fc lane-padded to CP with exact zeros.
    wfc_p = jnp.zeros((H, CP), jnp.float32).at[:, :C].set(params["wfc"])
    wslab = jnp.concatenate(
        [params["whh1"], params["wih2"], params["whh2"], wfc_p],
        axis=1).astype(jnp.bfloat16)                                     # (H, 3H+CP)

    bfc_p = jnp.zeros((1, CP), jnp.float32).at[:, :C].set(params["bfc"])
    bslab = jnp.concatenate([params["b2"], bfc_p], axis=1)               # (1, H+CP) f32

    kparams = {"emb_proj": emb_proj, "wslab": wslab, "bslab": bslab}
    return kparams, C


@functools.partial(jax.jit, static_argnames=("num_classes",))
def torch_rnn_forward(x_ids, kparams, num_classes):
    """x_ids: (B, T) int32 token ids. Returns (B, num_classes) logits."""
    B, T = x_ids.shape
    BP = 8 * ((B + 7) // 8)                     # pad batch to the 8-sublane tile
    H = kparams["emb_proj"].shape[1]
    CP = kparams["bslab"].shape[1] - H

    # Tiny glue: time-major flat ids, ghost rows use pad token 0 (zero embedding row).
    ids_pad = jnp.zeros((BP, T), jnp.int32).at[:B].set(x_ids.astype(jnp.int32))
    ids_tm = jnp.transpose(ids_pad).reshape(T * BP, 1)

    vmem = pl.BlockSpec(memory_space=pltpu.MemorySpace.VMEM)
    out_p = pl.pallas_call(
        rnn_fc_kernel,
        out_shape=jax.ShapeDtypeStruct((BP, CP), jnp.float32),
        in_specs=[vmem] * 4,
        out_specs=vmem,
    )(ids_tm, kparams["emb_proj"], kparams["wslab"], kparams["bslab"])

    return out_p[:B, :num_classes]


def init_params(key, vocab_size, vector_dim, hidden, sentence_length):
    ks = jax.random.split(key, 8)
    scale = 0.1
    emb = scale * jax.random.normal(ks[0], (vocab_size, vector_dim), jnp.float32)
    emb = emb.at[0].set(0.0)                  # padding_idx=0

    # Weights stored already transposed so the math is x @ W.
    wih1 = scale * jax.random.normal(ks[1], (vector_dim, hidden), jnp.float32)
    whh1 = scale * jax.random.normal(ks[2], (hidden, hidden), jnp.float32)
    b1 = scale * jax.random.normal(ks[3], (1, hidden), jnp.float32)   # b_ih + b_hh combined

    wih2 = scale * jax.random.normal(ks[4], (hidden, hidden), jnp.float32)
    whh2 = scale * jax.random.normal(ks[5], (hidden, hidden), jnp.float32)
    b2 = scale * jax.random.normal(ks[6], (1, hidden), jnp.float32)

    C = sentence_length + 1
    wfc = scale * jax.random.normal(ks[7], (hidden, C), jnp.float32)
    bfc = jnp.zeros((1, C), jnp.float32)

    return {"embedding": emb, "wih1": wih1, "whh1": whh1, "b1": b1,
            "wih2": wih2, "whh2": whh2, "b2": b2, "wfc": wfc, "bfc": bfc}


def reference_forward(x_ids, params):
    """Pure-JAX f32 reference of the same math (sanity check)."""
    x = jnp.take(params["embedding"], x_ids, axis=0)   # (B, T, D)
    B, T, _ = x.shape
    H = params["whh1"].shape[0]
    h1 = jnp.zeros((B, H), jnp.float32)
    h2 = jnp.zeros((B, H), jnp.float32)
    for t in range(T):
        h1 = jnp.tanh(x[:, t, :] @ params["wih1"] + h1 @ params["whh1"] + params["b1"])
        h2 = jnp.tanh(h1 @ params["wih2"] + h2 @ params["whh2"] + params["b2"])
    return h2 @ params["wfc"] + params["bfc"]


if __name__ == "__main__":
    # Small shapes consistent with the module:
    #   vector_dim=32, sentence_length=8, vocab=30, hidden=128 (fixed by nn.RNN), batch=2
    vector_dim = 32
    sentence_length = 8
    vocab_size = 30
    hidden = 128
    batch = 2

    key = jax.random.PRNGKey(0)
    pkey, xkey = jax.random.split(key)
    params = init_params(pkey, vocab_size, vector_dim, hidden, sentence_length)
    kparams, num_classes = prepare_params(params)

    x_ids = jax.random.randint(xkey, (batch, sentence_length), 0, vocab_size, jnp.int32)

    y_pred = torch_rnn_forward(x_ids, kparams, num_classes)
    y_pred = jax.block_until_ready(y_pred)

    y_ref = reference_forward(x_ids, params)
    assert y_pred.shape == (batch, sentence_length + 1)
    # bf16 MXU operands (f32 accumulation) -> loosened tolerance vs the f32 reference.
    assert jnp.allclose(y_pred, y_ref, atol=2e-2, rtol=2e-2), \
        float(jnp.max(jnp.abs(y_pred - y_ref)))

    print("KERNEL_OK")
</pallas_src>

<mosaic_0001>
module attributes {stable_mosaic.version = 11 : i64} {
  func.func @rnn_fc_kernel(%arg0: memref<64x1xi32, #tpu.memory_space<vmem>>, %arg1: memref<32x128xf32, #tpu.memory_space<vmem>>, %arg2: memref<128x512xbf16, #tpu.memory_space<vmem>>, %arg3: memref<1x256xf32, #tpu.memory_space<vmem>>, %arg4: memref<8x128xf32, #tpu.memory_space<vmem>>) attributes {dimension_semantics = [], scalar_prefetch = 0 : i64, scratch_operands = 0 : i64, tpu.core_type = #tpu.core_type<tc>} {
    %0 = tpu.iota {dimensions = array<i32: 1>} : vector<64x32xi32>
    %c0 = arith.constant 0 : index
    %c0_0 = arith.constant 0 : index
    %1 = vector.load %arg0[%c0, %c0_0] : memref<64x1xi32, #tpu.memory_space<vmem>>, vector<64x1xi32>
    %2 = vector.broadcast %1 : vector<64x1xi32> to vector<64x32xi32>
    %3 = arith.cmpi eq, %0, %2 : vector<64x32xi32>
    %4 = arith.extui %3 : vector<64x32xi1> to vector<64x32xi32>
    %5 = arith.sitofp %4 : vector<64x32xi32> to vector<64x32xf32>
    %c0_1 = arith.constant 0 : index
    %c0_2 = arith.constant 0 : index
    %6 = vector.load %arg1[%c0_1, %c0_2] : memref<32x128xf32, #tpu.memory_space<vmem>>, vector<32x128xf32>
    %cst = arith.constant dense<0.000000e+00> : vector<64x128xf32>
    %7 = tpu.matmul %5, %6, %cst {dimension_numbers = #tpu.dot_dimension_numbers<[1], [0], [0], [1], [0, 0, 1, 1], [], []>} : vector<64x32xf32>, vector<32x128xf32>, vector<64x128xf32> -> vector<64x128xf32>
    %c0_3 = arith.constant 0 : index
    %c0_4 = arith.constant 0 : index
    %8 = vector.load %arg2[%c0_3, %c0_4] : memref<128x512xbf16, #tpu.memory_space<vmem>>, vector<128x128xbf16>
    %c0_5 = arith.constant 0 : index
    %c128 = arith.constant 128 : index
    %9 = vector.load %arg2[%c0_5, %c128] : memref<128x512xbf16, #tpu.memory_space<vmem>>, vector<128x128xbf16>
    %c0_6 = arith.constant 0 : index
    %c256 = arith.constant 256 : index
    %10 = vector.load %arg2[%c0_6, %c256] : memref<128x512xbf16, #tpu.memory_space<vmem>>, vector<128x128xbf16>
    %c0_7 = arith.constant 0 : index
    %c384 = arith.constant 384 : index
    %11 = vector.load %arg2[%c0_7, %c384] : memref<128x512xbf16, #tpu.memory_space<vmem>>, vector<128x128xbf16>
    %c0_8 = arith.constant 0 : index
    %c0_9 = arith.constant 0 : index
    %12 = vector.load %arg3[%c0_8, %c0_9] : memref<1x256xf32, #tpu.memory_space<vmem>>, vector<1x128xf32>
    %13 = vector.shape_cast %12 : vector<1x128xf32> to vector<1x128xf32>
    %14 = vector.broadcast %13 : vector<1x128xf32> to vector<8x128xf32>
    %c0_10 = arith.constant 0 : index
    %c128_11 = arith.constant 128 : index
    %15 = vector.load %arg3[%c0_10, %c128_11] : memref<1x256xf32, #tpu.memory_space<vmem>>, vector<1x128xf32>
    %cst_12 = arith.constant 0.000000e+00 : f32
    %16 = vector.broadcast %cst_12 : f32 to vector<8x128xf32>
    %cst_13 = arith.constant 0.000000e+00 : f32
    %17 = vector.broadcast %cst_13 : f32 to vector<8x128xf32>
    %18 = arith.truncf %17 : vector<8x128xf32> to vector<8x128xbf16>
    %cst_14 = arith.constant dense<0.000000e+00> : vector<8x128xf32>
    %19 = tpu.matmul %18, %10, %cst_14 {dimension_numbers = #tpu.dot_dimension_numbers<[1], [0], [0], [1], [0, 0, 1, 1], [], []>} : vector<8x128xbf16>, vector<128x128xbf16>, vector<8x128xf32> -> vector<8x128xf32>
    %20 = arith.addf %19, %14 : vector<8x128xf32>
    %21 = vector.extract_strided_slice %7 {offsets = [0, 0], sizes = [8, 128], strides = [1, 1]} : vector<64x128xf32> to vector<8x128xf32>
    %22 = arith.truncf %16 : vector<8x128xf32> to vector<8x128xbf16>
    %cst_15 = arith.constant dense<0.000000e+00> : vector<8x128xf32>
    %23 = tpu.matmul %22, %8, %cst_15 {dimension_numbers = #tpu.dot_dimension_numbers<[1], [0], [0], [1], [0, 0, 1, 1], [], []>} : vector<8x128xbf16>, vector<128x128xbf16>, vector<8x128xf32> -> vector<8x128xf32>
    %24 = arith.addf %21, %23 : vector<8x128xf32>
    %25 = math.tanh %24 : vector<8x128xf32>
    %26 = arith.truncf %25 : vector<8x128xf32> to vector<8x128xbf16>
    %cst_16 = arith.constant dense<0.000000e+00> : vector<8x128xf32>
    %27 = tpu.matmul %26, %9, %cst_16 {dimension_numbers = #tpu.dot_dimension_numbers<[1], [0], [0], [1], [0, 0, 1, 1], [], []>} : vector<8x128xbf16>, vector<128x128xbf16>, vector<8x128xf32> -> vector<8x128xf32>
    %28 = arith.addf %27, %20 : vector<8x128xf32>
    %29 = math.tanh %28 : vector<8x128xf32>
    %30 = arith.truncf %29 : vector<8x128xf32> to vector<8x128xbf16>
    %cst_17 = arith.constant dense<0.000000e+00> : vector<8x128xf32>
    %31 = tpu.matmul %30, %10, %cst_17 {dimension_numbers = #tpu.dot_dimension_numbers<[1], [0], [0], [1], [0, 0, 1, 1], [], []>} : vector<8x128xbf16>, vector<128x128xbf16>, vector<8x128xf32> -> vector<8x128xf32>
    %32 = arith.addf %31, %14 : vector<8x128xf32>
    %33 = vector.extract_strided_slice %7 {offsets = [8, 0], sizes = [8, 128], strides = [1, 1]} : vector<64x128xf32> to vector<8x128xf32>
    %34 = arith.truncf %25 : vector<8x128xf32> to vector<8x128xbf16>
    %cst_18 = arith.constant dense<0.000000e+00> : vector<8x128xf32>
    %35 = tpu.matmul %34, %8, %cst_18 {dimension_numbers = #tpu.dot_dimension_numbers<[1], [0], [0], [1], [0, 0, 1, 1], [], []>} : vector<8x128xbf16>, vector<128x128xbf16>, vector<8x128xf32> -> vector<8x128xf32>
    %36 = arith.addf %33, %35 : vector<8x128xf32>
    %37 = math.tanh %36 : vector<8x128xf32>
    %38 = arith.truncf %37 : vector<8x128xf32> to vector<8x128xbf16>
    %cst_19 = arith.constant dense<0.000000e+00> : vector<8x128xf32>
    %39 = tpu.matmul %38, %9, %cst_19 {dimension_numbers = #tpu.dot_dimension_numbers<[1], [0], [0], [1], [0, 0, 1, 1], [], []>} : vector<8x128xbf16>, vector<128x128xbf16>, vector<8x128xf32> -> vector<8x128xf32>
    %40 = arith.addf %39, %32 : vector<8x128xf32>
    %41 = math.tanh %40 : vector<8x128xf32>
    %42 = arith.truncf %41 : vector<8x128xf32> to vector<8x128xbf16>
    %cst_20 = arith.constant dense<0.000000e+00> : vector<8x128xf32>
    %43 = tpu.matmul %42, %10, %cst_20 {dimension_numbers = #tpu.dot_dimension_numbers<[1], [0], [0], [1], [0, 0, 1, 1], [], []>} : vector<8x128xbf16>, vector<128x128xbf16>, vector<8x128xf32> -> vector<8x128xf32>
    %44 = arith.addf %43, %14 : vector<8x128xf32>
    %45 = vector.extract_strided_slice %7 {offsets = [16, 0], sizes = [8, 128], strides = [1, 1]} : vector<64x128xf32> to vector<8x128xf32>
    %46 = arith.truncf %37 : vector<8x128xf32> to vector<8x128xbf16>
    %cst_21 = arith.constant dense<0.000000e+00> : vector<8x128xf32>
    %47 = tpu.matmul %46, %8, %cst_21 {dimension_numbers = #tpu.dot_dimension_numbers<[1], [0], [0], [1], [0, 0, 1, 1], [], []>} : vector<8x128xbf16>, vector<128x128xbf16>, vector<8x128xf32> -> vector<8x128xf32>
    %48 = arith.addf %45, %47 : vector<8x128xf32>
    %49 = math.tanh %48 : vector<8x128xf32>
    %50 = arith.truncf %49 : vector<8x128xf32> to vector<8x128xbf16>
    %cst_22 = arith.constant dense<0.000000e+00> : vector<8x128xf32>
    %51 = tpu.matmul %50, %9, %cst_22 {dimension_numbers = #tpu.dot_dimension_numbers<[1], [0], [0], [1], [0, 0, 1, 1], [], []>} : vector<8x128xbf16>, vector<128x128xbf16>, vector<8x128xf32> -> vector<8x128xf32>
    %52 = arith.addf %51, %44 : vector<8x128xf32>
    %53 = math.tanh %52 : vector<8x128xf32>
    %54 = arith.truncf %53 : vector<8x128xf32> to vector<8x128xbf16>
    %cst_23 = arith.constant dense<0.000000e+00> : vector<8x128xf32>
    %55 = tpu.matmul %54, %10, %cst_23 {dimension_numbers = #tpu.dot_dimension_numbers<[1], [0], [0], [1], [0, 0, 1, 1], [], []>} : vector<8x128xbf16>, vector<128x128xbf16>, vector<8x128xf32> -> vector<8x128xf32>
    %56 = arith.addf %55, %14 : vector<8x128xf32>
    %57 = vector.extract_strided_slice %7 {offsets = [24, 0], sizes = [8, 128], strides = [1, 1]} : vector<64x128xf32> to vector<8x128xf32>
    %58 = arith.truncf %49 : vector<8x128xf32> to vector<8x128xbf16>
    %cst_24 = arith.constant dense<0.000000e+00> : vector<8x128xf32>
    %59 = tpu.matmul %58, %8, %cst_24 {dimension_numbers = #tpu.dot_dimension_numbers<[1], [0], [0], [1], [0, 0, 1, 1], [], []>} : vector<8x128xbf16>, vector<128x128xbf16>, vector<8x128xf32> -> vector<8x128xf32>
    %60 = arith.addf %57, %59 : vector<8x128xf32>
    %61 = math.tanh %60 : vector<8x128xf32>
    %62 = arith.truncf %61 : vector<8x128xf32> to vector<8x128xbf16>
    %cst_25 = arith.constant dense<0.000000e+00> : vector<8x128xf32>
    %63 = tpu.matmul %62, %9, %cst_25 {dimension_numbers = #tpu.dot_dimension_numbers<[1], [0], [0], [1], [0, 0, 1, 1], [], []>} : vector<8x128xbf16>, vector<128x128xbf16>, vector<8x128xf32> -> vector<8x128xf32>
    %64 = arith.addf %63, %56 : vector<8x128xf32>
    %65 = math.tanh %64 : vector<8x128xf32>
    %66 = arith.truncf %65 : vector<8x128xf32> to vector<8x128xbf16>
    %cst_26 = arith.constant dense<0.000000e+00> : vector<8x128xf32>
    %67 = tpu.matmul %66, %10, %cst_26 {dimension_numbers = #tpu.dot_dimension_numbers<[1], [0], [0], [1], [0, 0, 1, 1], [], []>} : vector<8x128xbf16>, vector<128x128xbf16>, vector<8x128xf32> -> vector<8x128xf32>
    %68 = arith.addf %67, %14 : vector<8x128xf32>
    %69 = vector.extract_strided_slice %7 {offsets = [32, 0], sizes = [8, 128], strides = [1, 1]} : vector<64x128xf32> to vector<8x128xf32>
    %70 = arith.truncf %61 : vector<8x128xf32> to vector<8x128xbf16>
    %cst_27 = arith.constant dense<0.000000e+00> : vector<8x128xf32>
    %71 = tpu.matmul %70, %8, %cst_27 {dimension_numbers = #tpu.dot_dimension_numbers<[1], [0], [0], [1], [0, 0, 1, 1], [], []>} : vector<8x128xbf16>, vector<128x128xbf16>, vector<8x128xf32> -> vector<8x128xf32>
    %72 = arith.addf %69, %71 : vector<8x128xf32>
    %73 = math.tanh %72 : vector<8x128xf32>
    %74 = arith.truncf %73 : vector<8x128xf32> to vector<8x128xbf16>
    %cst_28 = arith.constant dense<0.000000e+00> : vector<8x128xf32>
    %75 = tpu.matmul %74, %9, %cst_28 {dimension_numbers = #tpu.dot_dimension_numbers<[1], [0], [0], [1], [0, 0, 1, 1], [], []>} : vector<8x128xbf16>, vector<128x128xbf16>, vector<8x128xf32> -> vector<8x128xf32>
    %76 = arith.addf %75, %68 : vector<8x128xf32>
    %77 = math.tanh %76 : vector<8x128xf32>
    %78 = arith.truncf %77 : vector<8x128xf32> to vector<8x128xbf16>
    %cst_29 = arith.constant dense<0.000000e+00> : vector<8x128xf32>
    %79 = tpu.matmul %78, %10, %cst_29 {dimension_numbers = #tpu.dot_dimension_numbers<[1], [0], [0], [1], [0, 0, 1, 1], [], []>} : vector<8x128xbf16>, vector<128x128xbf16>, vector<8x128xf32> -> vector<8x128xf32>
    %80 = arith.addf %79, %14 : vector<8x128xf32>
    %81 = vector.extract_strided_slice %7 {offsets = [40, 0], sizes = [8, 128], strides = [1, 1]} : vector<64x128xf32> to vector<8x128xf32>
    %82 = arith.truncf %73 : vector<8x128xf32> to vector<8x128xbf16>
    %cst_30 = arith.constant dense<0.000000e+00> : vector<8x128xf32>
    %83 = tpu.matmul %82, %8, %cst_30 {dimension_numbers = #tpu.dot_dimension_numbers<[1], [0], [0], [1], [0, 0, 1, 1], [], []>} : vector<8x128xbf16>, vector<128x128xbf16>, vector<8x128xf32> -> vector<8x128xf32>
    %84 = arith.addf %81, %83 : vector<8x128xf32>
    %85 = math.tanh %84 : vector<8x128xf32>
    %86 = arith.truncf %85 : vector<8x128xf32> to vector<8x128xbf16>
    %cst_31 = arith.constant dense<0.000000e+00> : vector<8x128xf32>
    %87 = tpu.matmul %86, %9, %cst_31 {dimension_numbers = #tpu.dot_dimension_numbers<[1], [0], [0], [1], [0, 0, 1, 1], [], []>} : vector<8x128xbf16>, vector<128x128xbf16>, vector<8x128xf32> -> vector<8x128xf32>
    %88 = arith.addf %87, %80 : vector<8x128xf32>
    %89 = math.tanh %88 : vector<8x128xf32>
    %90 = arith.truncf %89 : vector<8x128xf32> to vector<8x128xbf16>
    %cst_32 = arith.constant dense<0.000000e+00> : vector<8x128xf32>
    %91 = tpu.matmul %90, %10, %cst_32 {dimension_numbers = #tpu.dot_dimension_numbers<[1], [0], [0], [1], [0, 0, 1, 1], [], []>} : vector<8x128xbf16>, vector<128x128xbf16>, vector<8x128xf32> -> vector<8x128xf32>
    %92 = arith.addf %91, %14 : vector<8x128xf32>
    %93 = vector.extract_strided_slice %7 {offsets = [48, 0], sizes = [8, 128], strides = [1, 1]} : vector<64x128xf32> to vector<8x128xf32>
    %94 = arith.truncf %85 : vector<8x128xf32> to vector<8x128xbf16>
    %cst_33 = arith.constant dense<0.000000e+00> : vector<8x128xf32>
    %95 = tpu.matmul %94, %8, %cst_33 {dimension_numbers = #tpu.dot_dimension_numbers<[1], [0], [0], [1], [0, 0, 1, 1], [], []>} : vector<8x128xbf16>, vector<128x128xbf16>, vector<8x128xf32> -> vector<8x128xf32>
    %96 = arith.addf %93, %95 : vector<8x128xf32>
    %97 = math.tanh %96 : vector<8x128xf32>
    %98 = arith.truncf %97 : vector<8x128xf32> to vector<8x128xbf16>
    %cst_34 = arith.constant dense<0.000000e+00> : vector<8x128xf32>
    %99 = tpu.matmul %98, %9, %cst_34 {dimension_numbers = #tpu.dot_dimension_numbers<[1], [0], [0], [1], [0, 0, 1, 1], [], []>} : vector<8x128xbf16>, vector<128x128xbf16>, vector<8x128xf32> -> vector<8x128xf32>
    %100 = arith.addf %99, %92 : vector<8x128xf32>
    %101 = math.tanh %100 : vector<8x128xf32>
    %102 = arith.truncf %101 : vector<8x128xf32> to vector<8x128xbf16>
    %cst_35 = arith.constant dense<0.000000e+00> : vector<8x128xf32>
    %103 = tpu.matmul %102, %10, %cst_35 {dimension_numbers = #tpu.dot_dimension_numbers<[1], [0], [0], [1], [0, 0, 1, 1], [], []>} : vector<8x128xbf16>, vector<128x128xbf16>, vector<8x128xf32> -> vector<8x128xf32>
    %104 = arith.addf %103, %14 : vector<8x128xf32>
    %105 = vector.extract_strided_slice %7 {offsets = [56, 0], sizes = [8, 128], strides = [1, 1]} : vector<64x128xf32> to vector<8x128xf32>
    %106 = arith.truncf %97 : vector<8x128xf32> to vector<8x128xbf16>
    %cst_36 = arith.constant dense<0.000000e+00> : vector<8x128xf32>
    %107 = tpu.matmul %106, %8, %cst_36 {dimension_numbers = #tpu.dot_dimension_numbers<[1], [0], [0], [1], [0, 0, 1, 1], [], []>} : vector<8x128xbf16>, vector<128x128xbf16>, vector<8x128xf32> -> vector<8x128xf32>
    %108 = arith.addf %105, %107 : vector<8x128xf32>
    %109 = math.tanh %108 : vector<8x128xf32>
    %110 = arith.truncf %109 : vector<8x128xf32> to vector<8x128xbf16>
    %cst_37 = arith.constant dense<0.000000e+00> : vector<8x128xf32>
    %111 = tpu.matmul %110, %9, %cst_37 {dimension_numbers = #tpu.dot_dimension_numbers<[1], [0], [0], [1], [0, 0, 1, 1], [], []>} : vector<8x128xbf16>, vector<128x128xbf16>, vector<8x128xf32> -> vector<8x128xf32>
    %112 = arith.addf %111, %104 : vector<8x128xf32>
    %113 = math.tanh %112 : vector<8x128xf32>
    %114 = arith.truncf %113 : vector<8x128xf32> to vector<8x128xbf16>
    %cst_38 = arith.constant dense<0.000000e+00> : vector<8x128xf32>
    %115 = tpu.matmul %114, %11, %cst_38 {dimension_numbers = #tpu.dot_dimension_numbers<[1], [0], [0], [1], [0, 0, 1, 1], [], []>} : vector<8x128xbf16>, vector<128x128xbf16>, vector<8x128xf32> -> vector<8x128xf32>
    %116 = vector.broadcast %15 : vector<1x128xf32> to vector<8x128xf32>
    %117 = arith.addf %115, %116 : vector<8x128xf32>
    %c0_39 = arith.constant 0 : index
    %c0_40 = arith.constant 0 : index
    %118 = vector.load %arg4[%c0_39, %c0_40] : memref<8x128xf32, #tpu.memory_space<vmem>>, vector<8x128xf32>
    tpu.vector_store %arg4[%c0_39, %c0_40], %117 {strides = array<i32>} : memref<8x128xf32, #tpu.memory_space<vmem>>, vector<8x128xf32>,
    return
  }
}

</mosaic_0001>

<llo_original>
// kernel: torch_rnn_forward.1
$region0: #{torch_rnn_forward.1}
  #allocation0 [shape = 'u32[]', space=smem, size = 0x4, offset = 0x4, fixed_abs, tag = 'smem constant byte address 0x4 - core index']
  #allocation1 [shape = 'u32[144,128]{1,0:T(1,128)}', space=vmem, size = 0x12000, scoped, tag = 'internal scratch']
  %s0 = inlined_call_operand.vmem [shape: s32[64,1], index: 0, kind: input, shape index: {}]
  %s1 = inlined_call_operand.vmem [shape: f32[32,128], index: 1, kind: input, shape index: {}]
  %s2 = inlined_call_operand.hbm [shape: bf16[128,512], index: 2, kind: input, shape index: {}]
  %s3 = inlined_call_operand.vmem [shape: f32[1,256], index: 3, kind: input, shape index: {}]
  %s4 = inlined_call_operand.vmem [shape: f32[8,128], index: 4, kind: output, shape index: {}]
  %s5 = sld [smem:[#allocation0]]
  $region30: #{torch_rnn_forward.1} parent=0
    _
  %s7 = ssub.s32 1, %s5
  %s8 = scalar_select 0, %s7, %s5
  $region1: #{torch_rnn_forward.1} parent=0
    #allocation2 [shape = 'u8[131072]{0}', space=vmem, size = 0x20000, scoped, tag = 'input window, operand 2, single buffered']
    #allocation3 [shape = 's32[1]{0}', space=sflag, size = 0x4, scoped, tag = 'scoped memory for torch_rnn_forward.1']
    %9 = vsyncpa [#allocation3], 0
    // Predicated region
    $region2: #{torch_rnn_forward.1} parent=1 // pred_check
      _
    $region3: #{torch_rnn_forward.1} parent=1 // pred_check_branch
      %11 = sbr.rel (0) target = $region5
    $region4: #{torch_rnn_forward.1} parent=1 // pred_region
      _
    $region5: #{torch_rnn_forward.1} parent=1 // pred_fallthru
      _
    // Predicated region
    $region6: #{torch_rnn_forward.1} parent=1 // pred_check
      _
    $region7: #{torch_rnn_forward.1} parent=1 // pred_check_branch
      %13 = sbr.rel (0) target = $region9
    $region8: #{torch_rnn_forward.1} parent=1 // pred_region
      _
    $region9: #{torch_rnn_forward.1} parent=1 // pred_fallthru
      _
    // Predicated region
    $region10: #{torch_rnn_forward.1} parent=1 // pred_check
      _
    $region11: #{torch_rnn_forward.1} parent=1 // pred_check_branch
      %15 = sbr.rel (0) target = $region13
    $region12: #{torch_rnn_forward.1} parent=1 // pred_region
      %s17 = ssub.s32 4096, 4096
      %18 = vsyncadd [#allocation3], %s17
      %s19 = sshll.u32 [#allocation2], 4
      %s20 = int_to_ptr.vmem [resolvable:$true] %s19
      %25 = dma.hbm_to_vmem [thread:$0]  %s2, 4096, %s20, [#allocation3], 256, 256, 16
    $region13: #{torch_rnn_forward.1} parent=1 // pred_fallthru
      _
    // Predicated region
    $region14: #{torch_rnn_forward.1} parent=1 // pred_check
      _
    $region15: #{torch_rnn_forward.1} parent=1 // pred_check_branch
      %27 = sbr.rel (0) target = $region17
    $region16: #{torch_rnn_forward.1} parent=1 // pred_region
      _
    $region17: #{torch_rnn_forward.1} parent=1 // pred_fallthru
      _
    // Predicated region
    $region18: #{torch_rnn_forward.1} parent=1 // pred_check
      _
    $region19: #{torch_rnn_forward.1} parent=1 // pred_check_branch
      %29 = sbr.rel (0) target = $region21
    $region20: #{torch_rnn_forward.1} parent=1 // pred_region
      %30 = dma.done [#allocation3], 4096
    $region21: #{torch_rnn_forward.1} parent=1 // pred_fallthru
      _
    %v32 = vlaneseq
    %v33 = vand.u32 %v32, 127
    %v34 = vld [vmem:[%s0] sm:$0xff]
    %v35 = vld [vmem:[%s0 + $0x8] sm:$0xff]
    %v36 = vld [vmem:[%s0 + $0x10] sm:$0xff]
    %v37 = vld [vmem:[%s0 + $0x18] sm:$0xff]
    %v38 = vld [vmem:[%s0 + $0x20] sm:$0xff]
    %v39 = vld [vmem:[%s0 + $0x28] sm:$0xff]
    %v40 = vld [vmem:[%s0 + $0x30] sm:$0xff]
    %v41 = vld [vmem:[%s0 + $0x38] sm:$0xff]
    %42 = vset.pattern.permute.xlu0 0
    %43 = vperm.xlu0 %42, %v34
    %v44 = vpop.permute.xlu0 %43
    %45 = vset.pattern.permute.xlu0 0
    %46 = vperm.xlu0 %45, %v35
    %v47 = vpop.permute.xlu0 %46
    %48 = vset.pattern.permute.xlu0 0
    %49 = vperm.xlu0 %48, %v36
    %v50 = vpop.permute.xlu0 %49
    %51 = vset.pattern.permute.xlu0 0
    %52 = vperm.xlu0 %51, %v37
    %v53 = vpop.permute.xlu0 %52
    %54 = vset.pattern.permute.xlu0 0
    %55 = vperm.xlu0 %54, %v38
    %v56 = vpop.permute.xlu0 %55
    %57 = vset.pattern.permute.xlu0 0
    %58 = vperm.xlu0 %57, %v39
    %v59 = vpop.permute.xlu0 %58
    %60 = vset.pattern.permute.xlu0 0
    %61 = vperm.xlu0 %60, %v40
    %v62 = vpop.permute.xlu0 %61
    %63 = vset.pattern.permute.xlu0 0
    %64 = vperm.xlu0 %63, %v41
    %v65 = vpop.permute.xlu0 %64
    %vm66 = vcmp.eq.s32.totalorder %v33, %v44
    %vm67 = vcmp.eq.s32.totalorder %v33, %v47
    %vm68 = vcmp.eq.s32.totalorder %v33, %v50
    %vm69 = vcmp.eq.s32.totalorder %v33, %v53
    %vm70 = vcmp.eq.s32.totalorder %v33, %v56
    %vm71 = vcmp.eq.s32.totalorder %v33, %v59
    %vm72 = vcmp.eq.s32.totalorder %v33, %v62
    %vm73 = vcmp.eq.s32.totalorder %v33, %v65
    %v74 = vsel %vm66, 1, 0
    %v75 = vsel %vm67, 1, 0
    %v76 = vsel %vm68, 1, 0
    %v77 = vsel %vm69, 1, 0
    %v78 = vsel %vm70, 1, 0
    %v79 = vsel %vm71, 1, 0
    %v80 = vsel %vm72, 1, 0
    %v81 = vsel %vm73, 1, 0
    %v82 = vcvt.s32.f32 %v74
    %v83 = vcvt.s32.f32 %v75
    %v84 = vcvt.s32.f32 %v76
    %v85 = vcvt.s32.f32 %v77
    %v86 = vcvt.s32.f32 %v78
    %v87 = vcvt.s32.f32 %v79
    %v88 = vcvt.s32.f32 %v80
    %v89 = vcvt.s32.f32 %v81
    %v90 = vld [vmem:[%s1] sm:$0xff]
    %v91 = vld [vmem:[%s1 + $0x8] sm:$0xff]
    %v92 = vld [vmem:[%s1 + $0x10] sm:$0xff]
    %v93 = vld [vmem:[%s1 + $0x18] sm:$0xff]
    %vm94 = vcmask 261120
    %v96 = vsel %vm94, %v82, 0
    %v99 = vsel %vm94, %v83, 0
    %v102 = vsel %vm94, %v84, 0
    %v105 = vsel %vm94, %v85, 0
    %v108 = vsel %vm94, %v86, 0
    %v111 = vsel %vm94, %v87, 0
    %v114 = vsel %vm94, %v88, 0
    %v117 = vsel %vm94, %v89, 0
    %119 = vmatprep.subr.mxu0 0.0
    %120 = vmatpush1.msra.mxu0 0.0
    %121 = vmatprep.subr.mxu0 0.0
    %122 = vmatpush1.msra.mxu0 0.0
    %123 = vmatprep.subr.mxu0 0.0
    %124 = vmatpush1.msra.mxu0 0.0
    %125 = vmatprep.subr.mxu0 0.0
    %126 = vmatpush1.msra.mxu0 0.0
    %127 = vmatprep.subr.mxu0 0.0
    %128 = vmatpush1.msra.mxu0 0.0
    %129 = vmatprep.subr.mxu0 0.0
    %130 = vmatpush1.msra.mxu0 0.0
    %131 = vmatprep.subr.mxu0 0.0
    %132 = vmatpush1.msra.mxu0 0.0
    %133 = vmatprep.subr.mxu0 0.0
    %134 = vmatpush1.msra.mxu0 0.0
    %135 = vmatprep.subr.mxu0 0.0
    %136 = vmatpush1.msra.mxu0 0.0
    %137 = vmatprep.subr.mxu0 0.0
    %138 = vmatpush1.msra.mxu0 0.0
    %139 = vmatprep.subr.mxu0 0.0
    %140 = vmatpush1.msra.mxu0 0.0
    %141 = vmatprep.subr.mxu0 0.0
    %142 = vmatpush1.msra.mxu0 0.0
    %143 = vmatprep.subr.mxu0 0.0
    %144 = vmatpush1.msra.mxu0 %v93
    %145 = vmatprep.subr.mxu0 0.0
    %146 = vmatpush1.msra.mxu0 %v92
    %147 = vmatprep.subr.mxu0 0.0
    %148 = vmatpush1.msra.mxu0 %v91
    %149 = vmatprep.subr.mxu0 0.0
    %150 = vmatpush1.msra.mxu0 %v90
    %151 = vmatprep.subr.mxu0 0.0
    %152 = vmatpush2.msra.mxu0 0.0
    %153 = vmatprep.subr.mxu0 0.0
    %154 = vmatpush2.msra.mxu0 0.0
    %155 = vmatprep.subr.mxu0 0.0
    %156 = vmatpush2.msra.mxu0 0.0
    %157 = vmatprep.subr.mxu0 0.0
    %158 = vmatpush2.msra.mxu0 0.0
    %159 = vmatprep.subr.mxu0 0.0
    %160 = vmatpush2.msra.mxu0 0.0
    %161 = vmatprep.subr.mxu0 0.0
    %162 = vmatpush2.msra.mxu0 0.0
    %163 = vmatprep.subr.mxu0 0.0
    %164 = vmatpush2.msra.mxu0 0.0
    %165 = vmatprep.subr.mxu0 0.0
    %166 = vmatpush2.msra.mxu0 0.0
    %167 = vmatprep.subr.mxu0 0.0
    %168 = vmatpush2.msra.mxu0 0.0
    %169 = vmatprep.subr.mxu0 0.0
    %170 = vmatpush2.msra.mxu0 0.0
    %171 = vmatprep.subr.mxu0 0.0
    %172 = vmatpush2.msra.mxu0 0.0
    %173 = vmatprep.subr.mxu0 0.0
    %174 = vmatpush2.msra.mxu0 0.0
    %175 = vmatprep.subr.mxu0 0.0
    %176 = vmatpush2.msra.mxu0 0.0
    %177 = vmatprep.subr.mxu0 0.0
    %178 = vmatpush2.msra.mxu0 0.0
    %179 = vmatprep.subr.mxu0 0.0
    %180 = vmatpush2.msra.mxu0 0.0
    %181 = vmatprep.subr.mxu0 0.0
    %182 = vmatpush2.msra.mxu0 0.0
    %183 = vmatprep.mubr.f32.mxu0 0.0
    %184 = vmatmul.mubr.f32.gmra.mxu0 %v96
    %v185 = vpop.f32.mrf.mxu0
    %v186 = vadd.f32 0.0, %v185
    %v187 = vpop.f32.mrf.mxu0
    %188 = vmatprep.mubr.f32.mxu0 0.0
    %189 = vmatmul.mubr.f32.gmra.mxu0 %v99
    %v190 = vpop.f32.mrf.mxu0
    %v191 = vadd.f32 0.0, %v190
    %v192 = vpop.f32.mrf.mxu0
    %193 = vmatprep.mubr.f32.mxu0 0.0
    %194 = vmatmul.mubr.f32.gmra.mxu0 %v102
    %v195 = vpop.f32.mrf.mxu0
    %v196 = vadd.f32 0.0, %v195
    %v197 = vpop.f32.mrf.mxu0
    %198 = vmatprep.mubr.f32.mxu0 0.0
    %199 = vmatmul.mubr.f32.gmra.mxu0 %v105
    %v200 = vpop.f32.mrf.mxu0
    %v201 = vadd.f32 0.0, %v200
    %v202 = vpop.f32.mrf.mxu0
    %203 = vmatprep.mubr.f32.mxu0 0.0
    %204 = vmatmul.mubr.f32.gmra.mxu0 %v108
    %v205 = vpop.f32.mrf.mxu0
    %v206 = vadd.f32 0.0, %v205
    %v207 = vpop.f32.mrf.mxu0
    %208 = vmatprep.mubr.f32.mxu0 0.0
    %209 = vmatmul.mubr.f32.gmra.mxu0 %v111
    %v210 = vpop.f32.mrf.mxu0
    %v211 = vadd.f32 0.0, %v210
    %v212 = vpop.f32.mrf.mxu0
    %213 = vmatprep.mubr.f32.mxu0 0.0
    %214 = vmatmul.mubr.f32.gmra.mxu0 %v114
    %v215 = vpop.f32.mrf.mxu0
    %v216 = vadd.f32 0.0, %v215
    %v217 = vpop.f32.mrf.mxu0
    %218 = vmatprep.mubr.f32.mxu0 0.0
    %219 = vmatmul.mubr.f32.gmra.mxu0 %v117
    %v220 = vpop.f32.mrf.mxu0
    %v221 = vadd.f32 0.0, %v220
    %v222 = vpop.f32.mrf.mxu0
    %223 = vdwg.mxu0
    %v224 = vld [vmem:[#allocation2] sm:$0xf]
    %v225 = vld [vmem:[#allocation2 + $0x10] sm:$0xf]
    %v226 = vld [vmem:[#allocation2 + $0x20] sm:$0xf]
    %v227 = vld [vmem:[#allocation2 + $0x30] sm:$0xf]
    %v228 = vld [vmem:[#allocation2 + $0x40] sm:$0xf]
    %v229 = vld [vmem:[#allocation2 + $0x50] sm:$0xf]
    %v230 = vld [vmem:[#allocation2 + $0x60] sm:$0xf]
    %v231 = vld [vmem:[#allocation2 + $0x70] sm:$0xf]
    %v232 = vld [vmem:[#allocation2 + $0x80] sm:$0xf]
    %v233 = vld [vmem:[#allocation2 + $0x90] sm:$0xf]
    %v234 = vld [vmem:[#allocation2 + $0xa0] sm:$0xf]
    %v235 = vld [vmem:[#allocation2 + $0xb0] sm:$0xf]
    %v236 = vld [vmem:[#allocation2 + $0xc0] sm:$0xf]
    %v237 = vld [vmem:[#allocation2 + $0xd0] sm:$0xf]
    %v238 = vld [vmem:[#allocation2 + $0xe0] sm:$0xf]
    %v239 = vld [vmem:[#allocation2 + $0xf0] sm:$0xf]
    %v240 = vld [vmem:[#allocation2 + $0x4] sm:$0xf]
    %v241 = vld [vmem:[#allocation2 + $0x14] sm:$0xf]
    %v242 = vld [vmem:[#allocation2 + $0x24] sm:$0xf]
    %v243 = vld [vmem:[#allocation2 + $0x34] sm:$0xf]
    %v244 = vld [vmem:[#allocation2 + $0x44] sm:$0xf]
    %v245 = vld [vmem:[#allocation2 + $0x54] sm:$0xf]
    %v246 = vld [vmem:[#allocation2 + $0x64] sm:$0xf]
    %v247 = vld [vmem:[#allocation2 + $0x74] sm:$0xf]
    %v248 = vld [vmem:[#allocation2 + $0x84] sm:$0xf]
    %v249 = vld [vmem:[#allocation2 + $0x94] sm:$0xf]
    %v250 = vld [vmem:[#allocation2 + $0xa4] sm:$0xf]
    %v251 = vld [vmem:[#allocation2 + $0xb4] sm:$0xf]
    %v252 = vld [vmem:[#allocation2 + $0xc4] sm:$0xf]
    %v253 = vld [vmem:[#allocation2 + $0xd4] sm:$0xf]
    %v254 = vld [vmem:[#allocation2 + $0xe4] sm:$0xf]
    %v255 = vld [vmem:[#allocation2 + $0xf4] sm:$0xf]
    %v256 = vld [vmem:[#allocation2 + $0x8] sm:$0xf]
    %v257 = vld [vmem:[#allocation2 + $0x18] sm:$0xf]
    %v258 = vld [vmem:[#allocation2 + $0x28] sm:$0xf]
    %v259 = vld [vmem:[#allocation2 + $0x38] sm:$0xf]
    %v260 = vld [vmem:[#allocation2 + $0x48] sm:$0xf]
    %v261 = vld [vmem:[#allocation2 + $0x58] sm:$0xf]
    %v262 = vld [vmem:[#allocation2 + $0x68] sm:$0xf]
    %v263 = vld [vmem:[#allocation2 + $0x78] sm:$0xf]
    %v264 = vld [vmem:[#allocation2 + $0x88] sm:$0xf]
    %v265 = vld [vmem:[#allocation2 + $0x98] sm:$0xf]
    %v266 = vld [vmem:[#allocation2 + $0xa8] sm:$0xf]
    %v267 = vld [vmem:[#allocation2 + $0xb8] sm:$0xf]
    %v268 = vld [vmem:[#allocation2 + $0xc8] sm:$0xf]
    %v269 = vld [vmem:[#allocation2 + $0xd8] sm:$0xf]
    %v270 = vld [vmem:[#allocation2 + $0xe8] sm:$0xf]
    %v271 = vld [vmem:[#allocation2 + $0xf8] sm:$0xf]
    %v272 = vld [vmem:[#allocation2 + $0xc] sm:$0xf]
    %v273 = vld [vmem:[#allocation2 + $0x1c] sm:$0xf]
    %v274 = vld [vmem:[#allocation2 + $0x2c] sm:$0xf]
    %v275 = vld [vmem:[#allocation2 + $0x3c] sm:$0xf]
    %v276 = vld [vmem:[#allocation2 + $0x4c] sm:$0xf]
    %v277 = vld [vmem:[#allocation2 + $0x5c] sm:$0xf]
    %v278 = vld [vmem:[#allocation2 + $0x6c] sm:$0xf]
    %v279 = vld [vmem:[#allocation2 + $0x7c] sm:$0xf]
    %v280 = vld [vmem:[#allocation2 + $0x8c] sm:$0xf]
    %v281 = vld [vmem:[#allocation2 + $0x9c] sm:$0xf]
    %v282 = vld [vmem:[#allocation2 + $0xac] sm:$0xf]
    %v283 = vld [vmem:[#allocation2 + $0xbc] sm:$0xf]
    %v284 = vld [vmem:[#allocation2 + $0xcc] sm:$0xf]
    %v285 = vld [vmem:[#allocation2 + $0xdc] sm:$0xf]
    %v286 = vld [vmem:[#allocation2 + $0xec] sm:$0xf]
    %v287 = vld [vmem:[#allocation2 + $0xfc] sm:$0xf]
    %v288 = vld [vmem:[%s3] sm:$0x1]
    %v290 = vlaneseq
    %v291 = vshrl.u32 %v290, 7
    %v292 = vsub.s32 0, %v291
    %v293 = vrot.slane %v288, %v292
    %v295 = vld [vmem:[%s3 + $0x1] sm:$0x1]
    %v312 = vunpack.c.l.b16 %v256
    %v313 = vunpack.c.l.b16 %v257
    %v314 = vunpack.c.l.b16 %v258
    %v315 = vunpack.c.l.b16 %v259
    %v316 = vunpack.c.l.b16 %v260
    %v317 = vunpack.c.l.b16 %v261
    %v318 = vunpack.c.l.b16 %v262
    %v319 = vunpack.c.l.b16 %v263
    %v320 = vunpack.c.l.b16 %v264
    %v321 = vunpack.c.l.b16 %v265
    %v322 = vunpack.c.l.b16 %v266
    %v323 = vunpack.c.l.b16 %v267
    %v324 = vunpack.c.l.b16 %v268
    %v325 = vunpack.c.l.b16 %v269
    %v326 = vunpack.c.l.b16 %v270
    %v327 = vunpack.c.l.b16 %v271
    %v328 = vpack.c.b16 %v313, %v312
    %v329 = vpack.c.b16 %v315, %v314
    %v330 = vpack.c.b16 %v317, %v316
    %v331 = vpack.c.b16 %v319, %v318
    %v332 = vpack.c.b16 %v321, %v320
    %v333 = vpack.c.b16 %v323, %v322
    %v334 = vpack.c.b16 %v325, %v324
    %v335 = vpack.c.b16 %v327, %v326
    %344 = vmatprep.subr.bf16.mxu0 0
    %345 = vmatpush1.bf16.msra.mxu0 %v335
    %346 = vmatprep.subr.bf16.mxu0 0
    %347 = vmatpush1.bf16.msra.mxu0 %v334
    %348 = vmatprep.subr.bf16.mxu0 0
    %349 = vmatpush1.bf16.msra.mxu0 %v333
    %350 = vmatprep.subr.bf16.mxu0 0
    %351 = vmatpush1.bf16.msra.mxu0 %v332
    %352 = vmatprep.subr.bf16.mxu0 0
    %353 = vmatpush1.bf16.msra.mxu0 %v331
    %354 = vmatprep.subr.bf16.mxu0 0
    %355 = vmatpush1.bf16.msra.mxu0 %v330
    %356 = vmatprep.subr.bf16.mxu0 0
    %357 = vmatpush1.bf16.msra.mxu0 %v329
    %358 = vmatprep.subr.bf16.mxu0 0
    %359 = vmatpush1.bf16.msra.mxu0 %v328
    %360 = vmatprep.subr.bf16.mxu0 0
    %361 = vmatpush2.bf16.msra.mxu0 0
    %362 = vmatprep.subr.bf16.mxu0 0
    %363 = vmatpush2.bf16.msra.mxu0 0
    %364 = vmatprep.subr.bf16.mxu0 0
    %365 = vmatpush2.bf16.msra.mxu0 0
    %366 = vmatprep.subr.bf16.mxu0 0
    %367 = vmatpush2.bf16.msra.mxu0 0
    %368 = vmatprep.subr.bf16.mxu0 0
    %369 = vmatpush2.bf16.msra.mxu0 0
    %370 = vmatprep.subr.bf16.mxu0 0
    %371 = vmatpush2.bf16.msra.mxu0 0
    %372 = vmatprep.subr.bf16.mxu0 0
    %373 = vmatpush2.bf16.msra.mxu0 0
    %374 = vmatprep.subr.bf16.mxu0 0
    %375 = vmatpush2.bf16.msra.mxu0 0
    %376 = vmatprep.mubr.bf16.mxu0 0
    %377 = vmatmul.mubr.bf16.gmra.mxu0 0
    %v378 = vpop.f32.mrf.mxu0
    %v379 = vadd.f32 %v293, %v378
    %v380 = vpop.f32.mrf.mxu0
    %v381 = vpop.f32.mrf.mxu0
    %v382 = vpop.f32.mrf.mxu0
    %383 = vdwg.mxu0
    %v400 = vunpack.c.l.b16 %v224
    %v401 = vunpack.c.l.b16 %v225
    %v402 = vunpack.c.l.b16 %v226
    %v403 = vunpack.c.l.b16 %v227
    %v404 = vunpack.c.l.b16 %v228
    %v405 = vunpack.c.l.b16 %v229
    %v406 = vunpack.c.l.b16 %v230
    %v407 = vunpack.c.l.b16 %v231
    %v408 = vunpack.c.l.b16 %v232
    %v409 = vunpack.c.l.b16 %v233
    %v410 = vunpack.c.l.b16 %v234
    %v411 = vunpack.c.l.b16 %v235
    %v412 = vunpack.c.l.b16 %v236
    %v413 = vunpack.c.l.b16 %v237
    %v414 = vunpack.c.l.b16 %v238
    %v415 = vunpack.c.l.b16 %v239
    %v416 = vpack.c.b16 %v401, %v400
    %v417 = vpack.c.b16 %v403, %v402
    %v418 = vpack.c.b16 %v405, %v404
    %v419 = vpack.c.b16 %v407, %v406
    %v420 = vpack.c.b16 %v409, %v408
    %v421 = vpack.c.b16 %v411, %v410
    %v422 = vpack.c.b16 %v413, %v412
    %v423 = vpack.c.b16 %v415, %v414
    %432 = vmatprep.subr.bf16.mxu0 0
    %433 = vmatpush1.bf16.msra.mxu0 %v423
    %434 = vmatprep.subr.bf16.mxu0 0
    %435 = vmatpush1.bf16.msra.mxu0 %v422
    %436 = vmatprep.subr.bf16.mxu0 0
    %437 = vmatpush1.bf16.msra.mxu0 %v421
    %438 = vmatprep.subr.bf16.mxu0 0
    %439 = vmatpush1.bf16.msra.mxu0 %v420
    %440 = vmatprep.subr.bf16.mxu0 0
    %441 = vmatpush1.bf16.msra.mxu0 %v419
    %442 = vmatprep.subr.bf16.mxu0 0
    %443 = vmatpush1.bf16.msra.mxu0 %v418
    %444 = vmatprep.subr.bf16.mxu0 0
    %445 = vmatpush1.bf16.msra.mxu0 %v417
    %446 = vmatprep.subr.bf16.mxu0 0
    %447 = vmatpush1.bf16.msra.mxu0 %v416
    %448 = vmatprep.subr.bf16.mxu0 0
    %449 = vmatpush2.bf16.msra.mxu0 0
    %450 = vmatprep.subr.bf16.mxu0 0
    %451 = vmatpush2.bf16.msra.mxu0 0
    %452 = vmatprep.subr.bf16.mxu0 0
    %453 = vmatpush2.bf16.msra.mxu0 0
    %454 = vmatprep.subr.bf16.mxu0 0
    %455 = vmatpush2.bf16.msra.mxu0 0
    %456 = vmatprep.subr.bf16.mxu0 0
    %457 = vmatpush2.bf16.msra.mxu0 0
    %458 = vmatprep.subr.bf16.mxu0 0
    %459 = vmatpush2.bf16.msra.mxu0 0
    %460 = vmatprep.subr.bf16.mxu0 0
    %461 = vmatpush2.bf16.msra.mxu0 0
    %462 = vmatprep.subr.bf16.mxu0 0
    %463 = vmatpush2.bf16.msra.mxu0 0
    %464 = vmatprep.mubr.bf16.mxu0 0
    %465 = vmatmul.mubr.bf16.gmra.mxu0 0
    %v466 = vpop.f32.mrf.mxu0
    %v467 = vadd.f32 0.0, %v466
    %v468 = vpop.f32.mrf.mxu0
    %v469 = vpop.f32.mrf.mxu0
    %v470 = vpop.f32.mrf.mxu0
    %471 = vdwg.mxu0
    %v472 = vadd.f32 %v186, %v467
    %v473 = vtanh.pop %v472
    %v474 = vpack.c.bf16 %v473, %v473
    %v491 = vunpack.c.l.b16 %v240
    %v492 = vunpack.c.l.b16 %v241
    %v493 = vunpack.c.l.b16 %v242
    %v494 = vunpack.c.l.b16 %v243
    %v495 = vunpack.c.l.b16 %v244
    %v496 = vunpack.c.l.b16 %v245
    %v497 = vunpack.c.l.b16 %v246
    %v498 = vunpack.c.l.b16 %v247
    %v499 = vunpack.c.l.b16 %v248
    %v500 = vunpack.c.l.b16 %v249
    %v501 = vunpack.c.l.b16 %v250
    %v502 = vunpack.c.l.b16 %v251
    %v503 = vunpack.c.l.b16 %v252
    %v504 = vunpack.c.l.b16 %v253
    %v505 = vunpack.c.l.b16 %v254
    %v506 = vunpack.c.l.b16 %v255
    %v507 = vpack.c.b16 %v492, %v491
    %v508 = vpack.c.b16 %v494, %v493
    %v509 = vpack.c.b16 %v496, %v495
    %v510 = vpack.c.b16 %v498, %v497
    %v511 = vpack.c.b16 %v500, %v499
    %v512 = vpack.c.b16 %v502, %v501
    %v513 = vpack.c.b16 %v504, %v503
    %v514 = vpack.c.b16 %v506, %v505
    %523 = vmatprep.subr.bf16.mxu0 0
    %524 = vmatpush1.bf16.msra.mxu0 %v514
    %525 = vmatprep.subr.bf16.mxu0 0
    %526 = vmatpush1.bf16.msra.mxu0 %v513
    %527 = vmatprep.subr.bf16.mxu0 0
    %528 = vmatpush1.bf16.msra.mxu0 %v512
    %529 = vmatprep.subr.bf16.mxu0 0
    %530 = vmatpush1.bf16.msra.mxu0 %v511
    %531 = vmatprep.subr.bf16.mxu0 0
    %532 = vmatpush1.bf16.msra.mxu0 %v510
    %533 = vmatprep.subr.bf16.mxu0 0
    %534 = vmatpush1.bf16.msra.mxu0 %v509
    %535 = vmatprep.subr.bf16.mxu0 0
    %536 = vmatpush1.bf16.msra.mxu0 %v508
    %537 = vmatprep.subr.bf16.mxu0 0
    %538 = vmatpush1.bf16.msra.mxu0 %v507
    %539 = vmatprep.subr.bf16.mxu0 0
    %540 = vmatpush2.bf16.msra.mxu0 0
    %541 = vmatprep.subr.bf16.mxu0 0
    %542 = vmatpush2.bf16.msra.mxu0 0
    %543 = vmatprep.subr.bf16.mxu0 0
    %544 = vmatpush2.bf16.msra.mxu0 0
    %545 = vmatprep.subr.bf16.mxu0 0
    %546 = vmatpush2.bf16.msra.mxu0 0
    %547 = vmatprep.subr.bf16.mxu0 0
    %548 = vmatpush2.bf16.msra.mxu0 0
    %549 = vmatprep.subr.bf16.mxu0 0
    %550 = vmatpush2.bf16.msra.mxu0 0
    %551 = vmatprep.subr.bf16.mxu0 0
    %552 = vmatpush2.bf16.msra.mxu0 0
    %553 = vmatprep.subr.bf16.mxu0 0
    %554 = vmatpush2.bf16.msra.mxu0 0
    %555 = vmatprep.mubr.bf16.mxu0 0
    %556 = vmatmul.mubr.bf16.gmra.mxu0 %v474
    %v557 = vpop.f32.mrf.mxu0
    %v558 = vadd.f32 %v379, %v557
    %v559 = vpop.f32.mrf.mxu0
    %v560 = vpop.f32.mrf.mxu0
    %v561 = vpop.f32.mrf.mxu0
    %562 = vdwg.mxu0
    %v563 = vtanh.pop %v558
    %v564 = vpack.c.bf16 %v563, %v563
    %565 = vmatprep.subr.bf16.mxu0 0
    %566 = vmatpush1.bf16.msra.mxu0 %v335
    %567 = vmatprep.subr.bf16.mxu0 0
    %568 = vmatpush1.bf16.msra.mxu0 %v334
    %569 = vmatprep.subr.bf16.mxu0 0
    %570 = vmatpush1.bf16.msra.mxu0 %v333
    %571 = vmatprep.subr.bf16.mxu0 0
    %572 = vmatpush1.bf16.msra.mxu0 %v332
    %573 = vmatprep.subr.bf16.mxu0 0
    %574 = vmatpush1.bf16.msra.mxu0 %v331
    %575 = vmatprep.subr.bf16.mxu0 0
    %576 = vmatpush1.bf16.msra.mxu0 %v330
    %577 = vmatprep.subr.bf16.mxu0 0
    %578 = vmatpush1.bf16.msra.mxu0 %v329
    %579 = vmatprep.subr.bf16.mxu0 0
    %580 = vmatpush1.bf16.msra.mxu0 %v328
    %581 = vmatprep.subr.bf16.mxu0 0
    %582 = vmatpush2.bf16.msra.mxu0 0
    %583 = vmatprep.subr.bf16.mxu0 0
    %584 = vmatpush2.bf16.msra.mxu0 0
    %585 = vmatprep.subr.bf16.mxu0 0
    %586 = vmatpush2.bf16.msra.mxu0 0
    %587 = vmatprep.subr.bf16.mxu0 0
    %588 = vmatpush2.bf16.msra.mxu0 0
    %589 = vmatprep.subr.bf16.mxu0 0
    %590 = vmatpush2.bf16.msra.mxu0 0
    %591 = vmatprep.subr.bf16.mxu0 0
    %592 = vmatpush2.bf16.msra.mxu0 0
    %593 = vmatprep.subr.bf16.mxu0 0
    %594 = vmatpush2.bf16.msra.mxu0 0
    %595 = vmatprep.subr.bf16.mxu0 0
    %596 = vmatpush2.bf16.msra.mxu0 0
    %597 = vmatprep.mubr.bf16.mxu0 0
    %598 = vmatmul.mubr.bf16.gmra.mxu0 %v564
    %v599 = vpop.f32.mrf.mxu0
    %v600 = vadd.f32 %v293, %v599
    %v601 = vpop.f32.mrf.mxu0
    %v602 = vpop.f32.mrf.mxu0
    %v603 = vpop.f32.mrf.mxu0
    %604 = vdwg.mxu0
    %605 = vmatprep.subr.bf16.mxu0 0
    %606 = vmatpush1.bf16.msra.mxu0 %v423
    %607 = vmatprep.subr.bf16.mxu0 0
    %608 = vmatpush1.bf16.msra.mxu0 %v422
    %609 = vmatprep.subr.bf16.mxu0 0
    %610 = vmatpush1.bf16.msra.mxu0 %v421
    %611 = vmatprep.subr.bf16.mxu0 0
    %612 = vmatpush1.bf16.msra.mxu0 %v420
    %613 = vmatprep.subr.bf16.mxu0 0
    %614 = vmatpush1.bf16.msra.mxu0 %v419
    %615 = vmatprep.subr.bf16.mxu0 0
    %616 = vmatpush1.bf16.msra.mxu0 %v418
    %617 = vmatprep.subr.bf16.mxu0 0
    %618 = vmatpush1.bf16.msra.mxu0 %v417
    %619 = vmatprep.subr.bf16.mxu0 0
    %620 = vmatpush1.bf16.msra.mxu0 %v416
    %621 = vmatprep.subr.bf16.mxu0 0
    %622 = vmatpush2.bf16.msra.mxu0 0
    %623 = vmatprep.subr.bf16.mxu0 0
    %624 = vmatpush2.bf16.msra.mxu0 0
    %625 = vmatprep.subr.bf16.mxu0 0
    %626 = vmatpush2.bf16.msra.mxu0 0
    %627 = vmatprep.subr.bf16.mxu0 0
    %628 = vmatpush2.bf16.msra.mxu0 0
    %629 = vmatprep.subr.bf16.mxu0 0
    %630 = vmatpush2.bf16.msra.mxu0 0
    %631 = vmatprep.subr.bf16.mxu0 0
    %632 = vmatpush2.bf16.msra.mxu0 0
    %633 = vmatprep.subr.bf16.mxu0 0
    %634 = vmatpush2.bf16.msra.mxu0 0
    %635 = vmatprep.subr.bf16.mxu0 0
    %636 = vmatpush2.bf16.msra.mxu0 0
    %637 = vmatprep.mubr.bf16.mxu0 0
    %638 = vmatmul.mubr.bf16.gmra.mxu0 %v474
    %v639 = vpop.f32.mrf.mxu0
    %v640 = vadd.f32 0.0, %v639
    %v641 = vpop.f32.mrf.mxu0
    %v642 = vpop.f32.mrf.mxu0
    %v643 = vpop.f32.mrf.mxu0
    %644 = vdwg.mxu0
    %v645 = vadd.f32 %v191, %v640
    %v646 = vtanh.pop %v645
    %v647 = vpack.c.bf16 %v646, %v646
    %648 = vmatprep.subr.bf16.mxu0 0
    %649 = vmatpush1.bf16.msra.mxu0 %v514
    %650 = vmatprep.subr.bf16.mxu0 0
    %651 = vmatpush1.bf16.msra.mxu0 %v513
    %652 = vmatprep.subr.bf16.mxu0 0
    %653 = vmatpush1.bf16.msra.mxu0 %v512
    %654 = vmatprep.subr.bf16.mxu0 0
    %655 = vmatpush1.bf16.msra.mxu0 %v511
    %656 = vmatprep.subr.bf16.mxu0 0
    %657 = vmatpush1.bf16.msra.mxu0 %v510
    %658 = vmatprep.subr.bf16.mxu0 0
    %659 = vmatpush1.bf16.msra.mxu0 %v509
    %660 = vmatprep.subr.bf16.mxu0 0
    %661 = vmatpush1.bf16.msra.mxu0 %v508
    %662 = vmatprep.subr.bf16.mxu0 0
    %663 = vmatpush1.bf16.msra.mxu0 %v507
    %664 = vmatprep.subr.bf16.mxu0 0
    %665 = vmatpush2.bf16.msra.mxu0 0
    %666 = vmatprep.subr.bf16.mxu0 0
    %667 = vmatpush2.bf16.msra.mxu0 0
    %668 = vmatprep.subr.bf16.mxu0 0
    %669 = vmatpush2.bf16.msra.mxu0 0
    %670 = vmatprep.subr.bf16.mxu0 0
    %671 = vmatpush2.bf16.msra.mxu0 0
    %672 = vmatprep.subr.bf16.mxu0 0
    %673 = vmatpush2.bf16.msra.mxu0 0
    %674 = vmatprep.subr.bf16.mxu0 0
    %675 = vmatpush2.bf16.msra.mxu0 0
    %676 = vmatprep.subr.bf16.mxu0 0
    %677 = vmatpush2.bf16.msra.mxu0 0
    %678 = vmatprep.subr.bf16.mxu0 0
    %679 = vmatpush2.bf16.msra.mxu0 0
    %680 = vmatprep.mubr.bf16.mxu0 0
    %681 = vmatmul.mubr.bf16.gmra.mxu0 %v647
    %v682 = vpop.f32.mrf.mxu0
    %v683 = vadd.f32 %v600, %v682
    %v684 = vpop.f32.mrf.mxu0
    %v685 = vpop.f32.mrf.mxu0
    %v686 = vpop.f32.mrf.mxu0
    %687 = vdwg.mxu0
    %v688 = vtanh.pop %v683
    %v689 = vpack.c.bf16 %v688, %v688
    %690 = vmatprep.subr.bf16.mxu0 0
    %691 = vmatpush1.bf16.msra.mxu0 %v335
    %692 = vmatprep.subr.bf16.mxu0 0
    %693 = vmatpush1.bf16.msra.mxu0 %v334
    %694 = vmatprep.subr.bf16.mxu0 0
    %695 = vmatpush1.bf16.msra.mxu0 %v333
    %696 = vmatprep.subr.bf16.mxu0 0
    %697 = vmatpush1.bf16.msra.mxu0 %v332
    %698 = vmatprep.subr.bf16.mxu0 0
    %699 = vmatpush1.bf16.msra.mxu0 %v331
    %700 = vmatprep.subr.bf16.mxu0 0
    %701 = vmatpush1.bf16.msra.mxu0 %v330
    %702 = vmatprep.subr.bf16.mxu0 0
    %703 = vmatpush1.bf16.msra.mxu0 %v329
    %704 = vmatprep.subr.bf16.mxu0 0
    %705 = vmatpush1.bf16.msra.mxu0 %v328
    %706 = vmatprep.subr.bf16.mxu0 0
    %707 = vmatpush2.bf16.msra.mxu0 0
    %708 = vmatprep.subr.bf16.mxu0 0
    %709 = vmatpush2.bf16.msra.mxu0 0
    %710 = vmatprep.subr.bf16.mxu0 0
    %711 = vmatpush2.bf16.msra.mxu0 0
    %712 = vmatprep.subr.bf16.mxu0 0
    %713 = vmatpush2.bf16.msra.mxu0 0
    %714 = vmatprep.subr.bf16.mxu0 0
    %715 = vmatpush2.bf16.msra.mxu0 0
    %716 = vmatprep.subr.bf16.mxu0 0
    %717 = vmatpush2.bf16.msra.mxu0 0
    %718 = vmatprep.subr.bf16.mxu0 0
    %719 = vmatpush2.bf16.msra.mxu0 0
    %720 = vmatprep.subr.bf16.mxu0 0
    %721 = vmatpush2.bf16.msra.mxu0 0
    %722 = vmatprep.mubr.bf16.mxu0 0
    %723 = vmatmul.mubr.bf16.gmra.mxu0 %v689
    %v724 = vpop.f32.mrf.mxu0
    %v725 = vadd.f32 %v293, %v724
    %v726 = vpop.f32.mrf.mxu0
    %v727 = vpop.f32.mrf.mxu0
    %v728 = vpop.f32.mrf.mxu0
    %729 = vdwg.mxu0
    %730 = vmatprep.subr.bf16.mxu0 0
    %731 = vmatpush1.bf16.msra.mxu0 %v423
    %732 = vmatprep.subr.bf16.mxu0 0
    %733 = vmatpush1.bf16.msra.mxu0 %v422
    %734 = vmatprep.subr.bf16.mxu0 0
    %735 = vmatpush1.bf16.msra.mxu0 %v421
    %736 = vmatprep.subr.bf16.mxu0 0
    %737 = vmatpush1.bf16.msra.mxu0 %v420
    %738 = vmatprep.subr.bf16.mxu0 0
    %739 = vmatpush1.bf16.msra.mxu0 %v419
    %740 = vmatprep.subr.bf16.mxu0 0
    %741 = vmatpush1.bf16.msra.mxu0 %v418
    %742 = vmatprep.subr.bf16.mxu0 0
    %743 = vmatpush1.bf16.msra.mxu0 %v417
    %744 = vmatprep.subr.bf16.mxu0 0
    %745 = vmatpush1.bf16.msra.mxu0 %v416
    %746 = vmatprep.subr.bf16.mxu0 0
    %747 = vmatpush2.bf16.msra.mxu0 0
    %748 = vmatprep.subr.bf16.mxu0 0
    %749 = vmatpush2.bf16.msra.mxu0 0
    %750 = vmatprep.subr.bf16.mxu0 0
    %751 = vmatpush2.bf16.msra.mxu0 0
    %752 = vmatprep.subr.bf16.mxu0 0
    %753 = vmatpush2.bf16.msra.mxu0 0
    %754 = vmatprep.subr.bf16.mxu0 0
    %755 = vmatpush2.bf16.msra.mxu0 0
    %756 = vmatprep.subr.bf16.mxu0 0
    %757 = vmatpush2.bf16.msra.mxu0 0
    %758 = vmatprep.subr.bf16.mxu0 0
    %759 = vmatpush2.bf16.msra.mxu0 0
    %760 = vmatprep.subr.bf16.mxu0 0
    %761 = vmatpush2.bf16.msra.mxu0 0
    %762 = vmatprep.mubr.bf16.mxu0 0
    %763 = vmatmul.mubr.bf16.gmra.mxu0 %v647
    %v764 = vpop.f32.mrf.mxu0
    %v765 = vadd.f32 0.0, %v764
    %v766 = vpop.f32.mrf.mxu0
    %v767 = vpop.f32.mrf.mxu0
    %v768 = vpop.f32.mrf.mxu0
    %769 = vdwg.mxu0
    %v770 = vadd.f32 %v196, %v765
    %v771 = vtanh.pop %v770
    %v772 = vpack.c.bf16 %v771, %v771
    %773 = vmatprep.subr.bf16.mxu0 0
    %774 = vmatpush1.bf16.msra.mxu0 %v514
    %775 = vmatprep.subr.bf16.mxu0 0
    %776 = vmatpush1.bf16.msra.mxu0 %v513
    %777 = vmatprep.subr.bf16.mxu0 0
    %778 = vmatpush1.bf16.msra.mxu0 %v512
    %779 = vmatprep.subr.bf16.mxu0 0
    %780 = vmatpush1.bf16.msra.mxu0 %v511
    %781 = vmatprep.subr.bf16.mxu0 0
    %782 = vmatpush1.bf16.msra.mxu0 %v510
    %783 = vmatprep.subr.bf16.mxu0 0
    %784 = vmatpush1.bf16.msra.mxu0 %v509
    %785 = vmatprep.subr.bf16.mxu0 0
    %786 = vmatpush1.bf16.msra.mxu0 %v508
    %787 = vmatprep.subr.bf16.mxu0 0
    %788 = vmatpush1.bf16.msra.mxu0 %v507
    %789 = vmatprep.subr.bf16.mxu0 0
    %790 = vmatpush2.bf16.msra.mxu0 0
    %791 = vmatprep.subr.bf16.mxu0 0
    %792 = vmatpush2.bf16.msra.mxu0 0
    %793 = vmatprep.subr.bf16.mxu0 0
    %794 = vmatpush2.bf16.msra.mxu0 0
    %795 = vmatprep.subr.bf16.mxu0 0
    %796 = vmatpush2.bf16.msra.mxu0 0
    %797 = vmatprep.subr.bf16.mxu0 0
    %798 = vmatpush2.bf16.msra.mxu0 0
    %799 = vmatprep.subr.bf16.mxu0 0
    %800 = vmatpush2.bf16.msra.mxu0 0
    %801 = vmatprep.subr.bf16.mxu0 0
    %802 = vmatpush2.bf16.msra.mxu0 0
    %803 = vmatprep.subr.bf16.mxu0 0
    %804 = vmatpush2.bf16.msra.mxu0 0
    %805 = vmatprep.mubr.bf16.mxu0 0
    %806 = vmatmul.mubr.bf16.gmra.mxu0 %v772
    %v807 = vpop.f32.mrf.mxu0
    %v808 = vadd.f32 %v725, %v807
    %v809 = vpop.f32.mrf.mxu0
    %v810 = vpop.f32.mrf.mxu0
    %v811 = vpop.f32.mrf.mxu0
    %812 = vdwg.mxu0
    %v813 = vtanh.pop %v808
    %v814 = vpack.c.bf16 %v813, %v813
    %815 = vmatprep.subr.bf16.mxu0 0
    %816 = vmatpush1.bf16.msra.mxu0 %v335
    %817 = vmatprep.subr.bf16.mxu0 0
    %818 = vmatpush1.bf16.msra.mxu0 %v334
    %819 = vmatprep.subr.bf16.mxu0 0
    %820 = vmatpush1.bf16.msra.mxu0 %v333
    %821 = vmatprep.subr.bf16.mxu0 0
    %822 = vmatpush1.bf16.msra.mxu0 %v332
    %823 = vmatprep.subr.bf16.mxu0 0
    %824 = vmatpush1.bf16.msra.mxu0 %v331
    %825 = vmatprep.subr.bf16.mxu0 0
    %826 = vmatpush1.bf16.msra.mxu0 %v330
    %827 = vmatprep.subr.bf16.mxu0 0
    %828 = vmatpush1.bf16.msra.mxu0 %v329
    %829 = vmatprep.subr.bf16.mxu0 0
    %830 = vmatpush1.bf16.msra.mxu0 %v328
    %831 = vmatprep.subr.bf16.mxu0 0
    %832 = vmatpush2.bf16.msra.mxu0 0
    %833 = vmatprep.subr.bf16.mxu0 0
    %834 = vmatpush2.bf16.msra.mxu0 0
    %835 = vmatprep.subr.bf16.mxu0 0
    %836 = vmatpush2.bf16.msra.mxu0 0
    %837 = vmatprep.subr.bf16.mxu0 0
    %838 = vmatpush2.bf16.msra.mxu0 0
    %839 = vmatprep.subr.bf16.mxu0 0
    %840 = vmatpush2.bf16.msra.mxu0 0
    %841 = vmatprep.subr.bf16.mxu0 0
    %842 = vmatpush2.bf16.msra.mxu0 0
    %843 = vmatprep.subr.bf16.mxu0 0
    %844 = vmatpush2.bf16.msra.mxu0 0
    %845 = vmatprep.subr.bf16.mxu0 0
    %846 = vmatpush2.bf16.msra.mxu0 0
    %847 = vmatprep.mubr.bf16.mxu0 0
    %848 = vmatmul.mubr.bf16.gmra.mxu0 %v814
    %v849 = vpop.f32.mrf.mxu0
    %v850 = vadd.f32 %v293, %v849
    %v851 = vpop.f32.mrf.mxu0
    %v852 = vpop.f32.mrf.mxu0
    %v853 = vpop.f32.mrf.mxu0
    %854 = vdwg.mxu0
    %855 = vmatprep.subr.bf16.mxu0 0
    %856 = vmatpush1.bf16.msra.mxu0 %v423
    %857 = vmatprep.subr.bf16.mxu0 0
    %858 = vmatpush1.bf16.msra.mxu0 %v422
    %859 = vmatprep.subr.bf16.mxu0 0
    %860 = vmatpush1.bf16.msra.mxu0 %v421
    %861 = vmatprep.subr.bf16.mxu0 0
    %862 = vmatpush1.bf16.msra.mxu0 %v420
    %863 = vmatprep.subr.bf16.mxu0 0
    %864 = vmatpush1.bf16.msra.mxu0 %v419
    %865 = vmatprep.subr.bf16.mxu0 0
    %866 = vmatpush1.bf16.msra.mxu0 %v418
    %867 = vmatprep.subr.bf16.mxu0 0
    %868 = vmatpush1.bf16.msra.mxu0 %v417
    %869 = vmatprep.subr.bf16.mxu0 0
    %870 = vmatpush1.bf16.msra.mxu0 %v416
    %871 = vmatprep.subr.bf16.mxu0 0
    %872 = vmatpush2.bf16.msra.mxu0 0
    %873 = vmatprep.subr.bf16.mxu0 0
    %874 = vmatpush2.bf16.msra.mxu0 0
    %875 = vmatprep.subr.bf16.mxu0 0
    %876 = vmatpush2.bf16.msra.mxu0 0
    %877 = vmatprep.subr.bf16.mxu0 0
    %878 = vmatpush2.bf16.msra.mxu0 0
    %879 = vmatprep.subr.bf16.mxu0 0
    %880 = vmatpush2.bf16.msra.mxu0 0
    %881 = vmatprep.subr.bf16.mxu0 0
    %882 = vmatpush2.bf16.msra.mxu0 0
    %883 = vmatprep.subr.bf16.mxu0 0
    %884 = vmatpush2.bf16.msra.mxu0 0
    %885 = vmatprep.subr.bf16.mxu0 0
    %886 = vmatpush2.bf16.msra.mxu0 0
    %887 = vmatprep.mubr.bf16.mxu0 0
    %888 = vmatmul.mubr.bf16.gmra.mxu0 %v772
    %v889 = vpop.f32.mrf.mxu0
    %v890 = vadd.f32 0.0, %v889
    %v891 = vpop.f32.mrf.mxu0
    %v892 = vpop.f32.mrf.mxu0
    %v893 = vpop.f32.mrf.mxu0
    %894 = vdwg.mxu0
    %v895 = vadd.f32 %v201, %v890
    %v896 = vtanh.pop %v895
    %v897 = vpack.c.bf16 %v896, %v896
    %898 = vmatprep.subr.bf16.mxu0 0
    %899 = vmatpush1.bf16.msra.mxu0 %v514
    %900 = vmatprep.subr.bf16.mxu0 0
    %901 = vmatpush1.bf16.msra.mxu0 %v513
    %902 = vmatprep.subr.bf16.mxu0 0
    %903 = vmatpush1.bf16.msra.mxu0 %v512
    %904 = vmatprep.subr.bf16.mxu0 0
    %905 = vmatpush1.bf16.msra.mxu0 %v511
    %906 = vmatprep.subr.bf16.mxu0 0
    %907 = vmatpush1.bf16.msra.mxu0 %v510
    %908 = vmatprep.subr.bf16.mxu0 0
    %909 = vmatpush1.bf16.msra.mxu0 %v509
    %910 = vmatprep.subr.bf16.mxu0 0
    %911 = vmatpush1.bf16.msra.mxu0 %v508
    %912 = vmatprep.subr.bf16.mxu0 0
    %913 = vmatpush1.bf16.msra.mxu0 %v507
    %914 = vmatprep.subr.bf16.mxu0 0
    %915 = vmatpush2.bf16.msra.mxu0 0
    %916 = vmatprep.subr.bf16.mxu0 0
    %917 = vmatpush2.bf16.msra.mxu0 0
    %918 = vmatprep.subr.bf16.mxu0 0
    %919 = vmatpush2.bf16.msra.mxu0 0
    %920 = vmatprep.subr.bf16.mxu0 0
    %921 = vmatpush2.bf16.msra.mxu0 0
    %922 = vmatprep.subr.bf16.mxu0 0
    %923 = vmatpush2.bf16.msra.mxu0 0
    %924 = vmatprep.subr.bf16.mxu0 0
    %925 = vmatpush2.bf16.msra.mxu0 0
    %926 = vmatprep.subr.bf16.mxu0 0
    %927 = vmatpush2.bf16.msra.mxu0 0
    %928 = vmatprep.subr.bf16.mxu0 0
    %929 = vmatpush2.bf16.msra.mxu0 0
    %930 = vmatprep.mubr.bf16.mxu0 0
    %931 = vmatmul.mubr.bf16.gmra.mxu0 %v897
    %v932 = vpop.f32.mrf.mxu0
    %v933 = vadd.f32 %v850, %v932
    %v934 = vpop.f32.mrf.mxu0
    %v935 = vpop.f32.mrf.mxu0
    %v936 = vpop.f32.mrf.mxu0
    %937 = vdwg.mxu0
    %v938 = vtanh.pop %v933
    %v939 = vpack.c.bf16 %v938, %v938
    %940 = vmatprep.subr.bf16.mxu0 0
    %941 = vmatpush1.bf16.msra.mxu0 %v335
    %942 = vmatprep.subr.bf16.mxu0 0
    %943 = vmatpush1.bf16.msra.mxu0 %v334
    %944 = vmatprep.subr.bf16.mxu0 0
    %945 = vmatpush1.bf16.msra.mxu0 %v333
    %946 = vmatprep.subr.bf16.mxu0 0
    %947 = vmatpush1.bf16.msra.mxu0 %v332
    %948 = vmatprep.subr.bf16.mxu0 0
    %949 = vmatpush1.bf16.msra.mxu0 %v331
    %950 = vmatprep.subr.bf16.mxu0 0
    %951 = vmatpush1.bf16.msra.mxu0 %v330
    %952 = vmatprep.subr.bf16.mxu0 0
    %953 = vmatpush1.bf16.msra.mxu0 %v329
    %954 = vmatprep.subr.bf16.mxu0 0
    %955 = vmatpush1.bf16.msra.mxu0 %v328
    %956 = vmatprep.subr.bf16.mxu0 0
    %957 = vmatpush2.bf16.msra.mxu0 0
    %958 = vmatprep.subr.bf16.mxu0 0
    %959 = vmatpush2.bf16.msra.mxu0 0
    %960 = vmatprep.subr.bf16.mxu0 0
    %961 = vmatpush2.bf16.msra.mxu0 0
    %962 = vmatprep.subr.bf16.mxu0 0
    %963 = vmatpush2.bf16.msra.mxu0 0
    %964 = vmatprep.subr.bf16.mxu0 0
    %965 = vmatpush2.bf16.msra.mxu0 0
    %966 = vmatprep.subr.bf16.mxu0 0
    %967 = vmatpush2.bf16.msra.mxu0 0
    %968 = vmatprep.subr.bf16.mxu0 0
    %969 = vmatpush2.bf16.msra.mxu0 0
    %970 = vmatprep.subr.bf16.mxu0 0
    %971 = vmatpush2.bf16.msra.mxu0 0
    %972 = vmatprep.mubr.bf16.mxu0 0
    %973 = vmatmul.mubr.bf16.gmra.mxu0 %v939
    %v974 = vpop.f32.mrf.mxu0
    %v975 = vadd.f32 %v293, %v974
    %v976 = vpop.f32.mrf.mxu0
    %v977 = vpop.f32.mrf.mxu0
    %v978 = vpop.f32.mrf.mxu0
    %979 = vdwg.mxu0
    %980 = vmatprep.subr.bf16.mxu0 0
    %981 = vmatpush1.bf16.msra.mxu0 %v423
    %982 = vmatprep.subr.bf16.mxu0 0
    %983 = vmatpush1.bf16.msra.mxu0 %v422
    %984 = vmatprep.subr.bf16.mxu0 0
    %985 = vmatpush1.bf16.msra.mxu0 %v421
    %986 = vmatprep.subr.bf16.mxu0 0
    %987 = vmatpush1.bf16.msra.mxu0 %v420
    %988 = vmatprep.subr.bf16.mxu0 0
    %989 = vmatpush1.bf16.msra.mxu0 %v419
    %990 = vmatprep.subr.bf16.mxu0 0
    %991 = vmatpush1.bf16.msra.mxu0 %v418
    %992 = vmatprep.subr.bf16.mxu0 0
    %993 = vmatpush1.bf16.msra.mxu0 %v417
    %994 = vmatprep.subr.bf16.mxu0 0
    %995 = vmatpush1.bf16.msra.mxu0 %v416
    %996 = vmatprep.subr.bf16.mxu0 0
    %997 = vmatpush2.bf16.msra.mxu0 0
    %998 = vmatprep.subr.bf16.mxu0 0
    %999 = vmatpush2.bf16.msra.mxu0 0
    %1000 = vmatprep.subr.bf16.mxu0 0
    %1001 = vmatpush2.bf16.msra.mxu0 0
    %1002 = vmatprep.subr.bf16.mxu0 0
    %1003 = vmatpush2.bf16.msra.mxu0 0
    %1004 = vmatprep.subr.bf16.mxu0 0
    %1005 = vmatpush2.bf16.msra.mxu0 0
    %1006 = vmatprep.subr.bf16.mxu0 0
    %1007 = vmatpush2.bf16.msra.mxu0 0
    %1008 = vmatprep.subr.bf16.mxu0 0
    %1009 = vmatpush2.bf16.msra.mxu0 0
    %1010 = vmatprep.subr.bf16.mxu0 0
    %1011 = vmatpush2.bf16.msra.mxu0 0
    %1012 = vmatprep.mubr.bf16.mxu0 0
    %1013 = vmatmul.mubr.bf16.gmra.mxu0 %v897
    %v1014 = vpop.f32.mrf.mxu0
    %v1015 = vadd.f32 0.0, %v1014
    %v1016 = vpop.f32.mrf.mxu0
    %v1017 = vpop.f32.mrf.mxu0
    %v1018 = vpop.f32.mrf.mxu0
    %1019 = vdwg.mxu0
    %v1020 = vadd.f32 %v206, %v1015
    %v1021 = vtanh.pop %v1020
    %v1022 = vpack.c.bf16 %v1021, %v1021
    %1023 = vmatprep.subr.bf16.mxu0 0
    %1024 = vmatpush1.bf16.msra.mxu0 %v514
    %1025 = vmatprep.subr.bf16.mxu0 0
    %1026 = vmatpush1.bf16.msra.mxu0 %v513
    %1027 = vmatprep.subr.bf16.mxu0 0
    %1028 = vmatpush1.bf16.msra.mxu0 %v512
    %1029 = vmatprep.subr.bf16.mxu0 0
    %1030 = vmatpush1.bf16.msra.mxu0 %v511
    %1031 = vmatprep.subr.bf16.mxu0 0
    %1032 = vmatpush1.bf16.msra.mxu0 %v510
    %1033 = vmatprep.subr.bf16.mxu0 0
    %1034 = vmatpush1.bf16.msra.mxu0 %v509
    %1035 = vmatprep.subr.bf16.mxu0 0
    %1036 = vmatpush1.bf16.msra.mxu0 %v508
    %1037 = vmatprep.subr.bf16.mxu0 0
    %1038 = vmatpush1.bf16.msra.mxu0 %v507
    %1039 = vmatprep.subr.bf16.mxu0 0
    %1040 = vmatpush2.bf16.msra.mxu0 0
    %1041 = vmatprep.subr.bf16.mxu0 0
    %1042 = vmatpush2.bf16.msra.mxu0 0
    %1043 = vmatprep.subr.bf16.mxu0 0
    %1044 = vmatpush2.bf16.msra.mxu0 0
    %1045 = vmatprep.subr.bf16.mxu0 0
    %1046 = vmatpush2.bf16.msra.mxu0 0
    %1047 = vmatprep.subr.bf16.mxu0 0
    %1048 = vmatpush2.bf16.msra.mxu0 0
    %1049 = vmatprep.subr.bf16.mxu0 0
    %1050 = vmatpush2.bf16.msra.mxu0 0
    %1051 = vmatprep.subr.bf16.mxu0 0
    %1052 = vmatpush2.bf16.msra.mxu0 0
    %1053 = vmatprep.subr.bf16.mxu0 0
    %1054 = vmatpush2.bf16.msra.mxu0 0
    %1055 = vmatprep.mubr.bf16.mxu0 0
    %1056 = vmatmul.mubr.bf16.gmra.mxu0 %v1022
    %v1057 = vpop.f32.mrf.mxu0
    %v1058 = vadd.f32 %v975, %v1057
    %v1059 = vpop.f32.mrf.mxu0
    %v1060 = vpop.f32.mrf.mxu0
    %v1061 = vpop.f32.mrf.mxu0
    %1062 = vdwg.mxu0
    %v1063 = vtanh.pop %v1058
    %v1064 = vpack.c.bf16 %v1063, %v1063
    %1065 = vmatprep.subr.bf16.mxu0 0
    %1066 = vmatpush1.bf16.msra.mxu0 %v335
    %1067 = vmatprep.subr.bf16.mxu0 0
    %1068 = vmatpush1.bf16.msra.mxu0 %v334
    %1069 = vmatprep.subr.bf16.mxu0 0
    %1070 = vmatpush1.bf16.msra.mxu0 %v333
    %1071 = vmatprep.subr.bf16.mxu0 0
    %1072 = vmatpush1.bf16.msra.mxu0 %v332
    %1073 = vmatprep.subr.bf16.mxu0 0
    %1074 = vmatpush1.bf16.msra.mxu0 %v331
    %1075 = vmatprep.subr.bf16.mxu0 0
    %1076 = vmatpush1.bf16.msra.mxu0 %v330
    %1077 = vmatprep.subr.bf16.mxu0 0
    %1078 = vmatpush1.bf16.msra.mxu0 %v329
    %1079 = vmatprep.subr.bf16.mxu0 0
    %1080 = vmatpush1.bf16.msra.mxu0 %v328
    %1081 = vmatprep.subr.bf16.mxu0 0
    %1082 = vmatpush2.bf16.msra.mxu0 0
    %1083 = vmatprep.subr.bf16.mxu0 0
    %1084 = vmatpush2.bf16.msra.mxu0 0
    %1085 = vmatprep.subr.bf16.mxu0 0
    %1086 = vmatpush2.bf16.msra.mxu0 0
    %1087 = vmatprep.subr.bf16.mxu0 0
    %1088 = vmatpush2.bf16.msra.mxu0 0
    %1089 = vmatprep.subr.bf16.mxu0 0
    %1090 = vmatpush2.bf16.msra.mxu0 0
    %1091 = vmatprep.subr.bf16.mxu0 0
    %1092 = vmatpush2.bf16.msra.mxu0 0
    %1093 = vmatprep.subr.bf16.mxu0 0
    %1094 = vmatpush2.bf16.msra.mxu0 0
    %1095 = vmatprep.subr.bf16.mxu0 0
    %1096 = vmatpush2.bf16.msra.mxu0 0
    %1097 = vmatprep.mubr.bf16.mxu0 0
    %1098 = vmatmul.mubr.bf16.gmra.mxu0 %v1064
    %v1099 = vpop.f32.mrf.mxu0
    %v1100 = vadd.f32 %v293, %v1099
    %v1101 = vpop.f32.mrf.mxu0
    %v1102 = vpop.f32.mrf.mxu0
    %v1103 = vpop.f32.mrf.mxu0
    %1104 = vdwg.mxu0
    %1105 = vmatprep.subr.bf16.mxu0 0
    %1106 = vmatpush1.bf16.msra.mxu0 %v423
    %1107 = vmatprep.subr.bf16.mxu0 0
    %1108 = vmatpush1.bf16.msra.mxu0 %v422
    %1109 = vmatprep.subr.bf16.mxu0 0
    %1110 = vmatpush1.bf16.msra.mxu0 %v421
    %1111 = vmatprep.subr.bf16.mxu0 0
    %1112 = vmatpush1.bf16.msra.mxu0 %v420
    %1113 = vmatprep.subr.bf16.mxu0 0
    %1114 = vmatpush1.bf16.msra.mxu0 %v419
    %1115 = vmatprep.subr.bf16.mxu0 0
    %1116 = vmatpush1.bf16.msra.mxu0 %v418
    %1117 = vmatprep.subr.bf16.mxu0 0
    %1118 = vmatpush1.bf16.msra.mxu0 %v417
    %1119 = vmatprep.subr.bf16.mxu0 0
    %1120 = vmatpush1.bf16.msra.mxu0 %v416
    %1121 = vmatprep.subr.bf16.mxu0 0
    %1122 = vmatpush2.bf16.msra.mxu0 0
    %1123 = vmatprep.subr.bf16.mxu0 0
    %1124 = vmatpush2.bf16.msra.mxu0 0
    %1125 = vmatprep.subr.bf16.mxu0 0
    %1126 = vmatpush2.bf16.msra.mxu0 0
    %1127 = vmatprep.subr.bf16.mxu0 0
    %1128 = vmatpush2.bf16.msra.mxu0 0
    %1129 = vmatprep.subr.bf16.mxu0 0
    %1130 = vmatpush2.bf16.msra.mxu0 0
    %1131 = vmatprep.subr.bf16.mxu0 0
    %1132 = vmatpush2.bf16.msra.mxu0 0
    %1133 = vmatprep.subr.bf16.mxu0 0
    %1134 = vmatpush2.bf16.msra.mxu0 0
    %1135 = vmatprep.subr.bf16.mxu0 0
    %1136 = vmatpush2.bf16.msra.mxu0 0
    %1137 = vmatprep.mubr.bf16.mxu0 0
    %1138 = vmatmul.mubr.bf16.gmra.mxu0 %v1022
    %v1139 = vpop.f32.mrf.mxu0
    %v1140 = vadd.f32 0.0, %v1139
    %v1141 = vpop.f32.mrf.mxu0
    %v1142 = vpop.f32.mrf.mxu0
    %v1143 = vpop.f32.mrf.mxu0
    %1144 = vdwg.mxu0
    %v1145 = vadd.f32 %v211, %v1140
    %v1146 = vtanh.pop %v1145
    %v1147 = vpack.c.bf16 %v1146, %v1146
    %1148 = vmatprep.subr.bf16.mxu0 0
    %1149 = vmatpush1.bf16.msra.mxu0 %v514
    %1150 = vmatprep.subr.bf16.mxu0 0
    %1151 = vmatpush1.bf16.msra.mxu0 %v513
    %1152 = vmatprep.subr.bf16.mxu0 0
    %1153 = vmatpush1.bf16.msra.mxu0 %v512
    %1154 = vmatprep.subr.bf16.mxu0 0
    %1155 = vmatpush1.bf16.msra.mxu0 %v511
    %1156 = vmatprep.subr.bf16.mxu0 0
    %1157 = vmatpush1.bf16.msra.mxu0 %v510
    %1158 = vmatprep.subr.bf16.mxu0 0
    %1159 = vmatpush1.bf16.msra.mxu0 %v509
    %1160 = vmatprep.subr.bf16.mxu0 0
    %1161 = vmatpush1.bf16.msra.mxu0 %v508
    %1162 = vmatprep.subr.bf16.mxu0 0
    %1163 = vmatpush1.bf16.msra.mxu0 %v507
    %1164 = vmatprep.subr.bf16.mxu0 0
    %1165 = vmatpush2.bf16.msra.mxu0 0
    %1166 = vmatprep.subr.bf16.mxu0 0
    %1167 = vmatpush2.bf16.msra.mxu0 0
    %1168 = vmatprep.subr.bf16.mxu0 0
    %1169 = vmatpush2.bf16.msra.mxu0 0
    %1170 = vmatprep.subr.bf16.mxu0 0
    %1171 = vmatpush2.bf16.msra.mxu0 0
    %1172 = vmatprep.subr.bf16.mxu0 0
    %1173 = vmatpush2.bf16.msra.mxu0 0
    %1174 = vmatprep.subr.bf16.mxu0 0
    %1175 = vmatpush2.bf16.msra.mxu0 0
    %1176 = vmatprep.subr.bf16.mxu0 0
    %1177 = vmatpush2.bf16.msra.mxu0 0
    %1178 = vmatprep.subr.bf16.mxu0 0
    %1179 = vmatpush2.bf16.msra.mxu0 0
    %1180 = vmatprep.mubr.bf16.mxu0 0
    %1181 = vmatmul.mubr.bf16.gmra.mxu0 %v1147
    %v1182 = vpop.f32.mrf.mxu0
    %v1183 = vadd.f32 %v1100, %v1182
    %v1184 = vpop.f32.mrf.mxu0
    %v1185 = vpop.f32.mrf.mxu0
    %v1186 = vpop.f32.mrf.mxu0
    %1187 = vdwg.mxu0
    %v1188 = vtanh.pop %v1183
    %v1189 = vpack.c.bf16 %v1188, %v1188
    %1190 = vmatprep.subr.bf16.mxu0 0
    %1191 = vmatpush1.bf16.msra.mxu0 %v335
    %1192 = vmatprep.subr.bf16.mxu0 0
    %1193 = vmatpush1.bf16.msra.mxu0 %v334
    %1194 = vmatprep.subr.bf16.mxu0 0
    %1195 = vmatpush1.bf16.msra.mxu0 %v333
    %1196 = vmatprep.subr.bf16.mxu0 0
    %1197 = vmatpush1.bf16.msra.mxu0 %v332
    %1198 = vmatprep.subr.bf16.mxu0 0
    %1199 = vmatpush1.bf16.msra.mxu0 %v331
    %1200 = vmatprep.subr.bf16.mxu0 0
    %1201 = vmatpush1.bf16.msra.mxu0 %v330
    %1202 = vmatprep.subr.bf16.mxu0 0
    %1203 = vmatpush1.bf16.msra.mxu0 %v329
    %1204 = vmatprep.subr.bf16.mxu0 0
    %1205 = vmatpush1.bf16.msra.mxu0 %v328
    %1206 = vmatprep.subr.bf16.mxu0 0
    %1207 = vmatpush2.bf16.msra.mxu0 0
    %1208 = vmatprep.subr.bf16.mxu0 0
    %1209 = vmatpush2.bf16.msra.mxu0 0
    %1210 = vmatprep.subr.bf16.mxu0 0
    %1211 = vmatpush2.bf16.msra.mxu0 0
    %1212 = vmatprep.subr.bf16.mxu0 0
    %1213 = vmatpush2.bf16.msra.mxu0 0
    %1214 = vmatprep.subr.bf16.mxu0 0
    %1215 = vmatpush2.bf16.msra.mxu0 0
    %1216 = vmatprep.subr.bf16.mxu0 0
    %1217 = vmatpush2.bf16.msra.mxu0 0
    %1218 = vmatprep.subr.bf16.mxu0 0
    %1219 = vmatpush2.bf16.msra.mxu0 0
    %1220 = vmatprep.subr.bf16.mxu0 0
    %1221 = vmatpush2.bf16.msra.mxu0 0
    %1222 = vmatprep.mubr.bf16.mxu0 0
    %1223 = vmatmul.mubr.bf16.gmra.mxu0 %v1189
    %v1224 = vpop.f32.mrf.mxu0
    %v1225 = vadd.f32 %v293, %v1224
    %v1226 = vpop.f32.mrf.mxu0
    %v1227 = vpop.f32.mrf.mxu0
    %v1228 = vpop.f32.mrf.mxu0
    %1229 = vdwg.mxu0
    %1230 = vmatprep.subr.bf16.mxu0 0
    %1231 = vmatpush1.bf16.msra.mxu0 %v423
    %1232 = vmatprep.subr.bf16.mxu0 0
    %1233 = vmatpush1.bf16.msra.mxu0 %v422
    %1234 = vmatprep.subr.bf16.mxu0 0
    %1235 = vmatpush1.bf16.msra.mxu0 %v421
    %1236 = vmatprep.subr.bf16.mxu0 0
    %1237 = vmatpush1.bf16.msra.mxu0 %v420
    %1238 = vmatprep.subr.bf16.mxu0 0
    %1239 = vmatpush1.bf16.msra.mxu0 %v419
    %1240 = vmatprep.subr.bf16.mxu0 0
    %1241 = vmatpush1.bf16.msra.mxu0 %v418
    %1242 = vmatprep.subr.bf16.mxu0 0
    %1243 = vmatpush1.bf16.msra.mxu0 %v417
    %1244 = vmatprep.subr.bf16.mxu0 0
    %1245 = vmatpush1.bf16.msra.mxu0 %v416
    %1246 = vmatprep.subr.bf16.mxu0 0
    %1247 = vmatpush2.bf16.msra.mxu0 0
    %1248 = vmatprep.subr.bf16.mxu0 0
    %1249 = vmatpush2.bf16.msra.mxu0 0
    %1250 = vmatprep.subr.bf16.mxu0 0
    %1251 = vmatpush2.bf16.msra.mxu0 0
    %1252 = vmatprep.subr.bf16.mxu0 0
    %1253 = vmatpush2.bf16.msra.mxu0 0
    %1254 = vmatprep.subr.bf16.mxu0 0
    %1255 = vmatpush2.bf16.msra.mxu0 0
    %1256 = vmatprep.subr.bf16.mxu0 0
    %1257 = vmatpush2.bf16.msra.mxu0 0
    %1258 = vmatprep.subr.bf16.mxu0 0
    %1259 = vmatpush2.bf16.msra.mxu0 0
    %1260 = vmatprep.subr.bf16.mxu0 0
    %1261 = vmatpush2.bf16.msra.mxu0 0
    %1262 = vmatprep.mubr.bf16.mxu0 0
    %1263 = vmatmul.mubr.bf16.gmra.mxu0 %v1147
    %v1264 = vpop.f32.mrf.mxu0
    %v1265 = vadd.f32 0.0, %v1264
    %v1266 = vpop.f32.mrf.mxu0
    %v1267 = vpop.f32.mrf.mxu0
    %v1268 = vpop.f32.mrf.mxu0
    %1269 = vdwg.mxu0
    %v1270 = vadd.f32 %v216, %v1265
    %v1271 = vtanh.pop %v1270
    %v1272 = vpack.c.bf16 %v1271, %v1271
    %1273 = vmatprep.subr.bf16.mxu0 0
    %1274 = vmatpush1.bf16.msra.mxu0 %v514
    %1275 = vmatprep.subr.bf16.mxu0 0
    %1276 = vmatpush1.bf16.msra.mxu0 %v513
    %1277 = vmatprep.subr.bf16.mxu0 0
    %1278 = vmatpush1.bf16.msra.mxu0 %v512
    %1279 = vmatprep.subr.bf16.mxu0 0
    %1280 = vmatpush1.bf16.msra.mxu0 %v511
    %1281 = vmatprep.subr.bf16.mxu0 0
    %1282 = vmatpush1.bf16.msra.mxu0 %v510
    %1283 = vmatprep.subr.bf16.mxu0 0
    %1284 = vmatpush1.bf16.msra.mxu0 %v509
    %1285 = vmatprep.subr.bf16.mxu0 0
    %1286 = vmatpush1.bf16.msra.mxu0 %v508
    %1287 = vmatprep.subr.bf16.mxu0 0
    %1288 = vmatpush1.bf16.msra.mxu0 %v507
    %1289 = vmatprep.subr.bf16.mxu0 0
    %1290 = vmatpush2.bf16.msra.mxu0 0
    %1291 = vmatprep.subr.bf16.mxu0 0
    %1292 = vmatpush2.bf16.msra.mxu0 0
    %1293 = vmatprep.subr.bf16.mxu0 0
    %1294 = vmatpush2.bf16.msra.mxu0 0
    %1295 = vmatprep.subr.bf16.mxu0 0
    %1296 = vmatpush2.bf16.msra.mxu0 0
    %1297 = vmatprep.subr.bf16.mxu0 0
    %1298 = vmatpush2.bf16.msra.mxu0 0
    %1299 = vmatprep.subr.bf16.mxu0 0
    %1300 = vmatpush2.bf16.msra.mxu0 0
    %1301 = vmatprep.subr.bf16.mxu0 0
    %1302 = vmatpush2.bf16.msra.mxu0 0
    %1303 = vmatprep.subr.bf16.mxu0 0
    %1304 = vmatpush2.bf16.msra.mxu0 0
    %1305 = vmatprep.mubr.bf16.mxu0 0
    %1306 = vmatmul.mubr.bf16.gmra.mxu0 %v1272
    %v1307 = vpop.f32.mrf.mxu0
    %v1308 = vadd.f32 %v1225, %v1307
    %v1309 = vpop.f32.mrf.mxu0
    %v1310 = vpop.f32.mrf.mxu0
    %v1311 = vpop.f32.mrf.mxu0
    %1312 = vdwg.mxu0
    %v1313 = vtanh.pop %v1308
    %v1314 = vpack.c.bf16 %v1313, %v1313
    %1315 = vmatprep.subr.bf16.mxu0 0
    %1316 = vmatpush1.bf16.msra.mxu0 %v335
    %1317 = vmatprep.subr.bf16.mxu0 0
    %1318 = vmatpush1.bf16.msra.mxu0 %v334
    %1319 = vmatprep.subr.bf16.mxu0 0
    %1320 = vmatpush1.bf16.msra.mxu0 %v333
    %1321 = vmatprep.subr.bf16.mxu0 0
    %1322 = vmatpush1.bf16.msra.mxu0 %v332
    %1323 = vmatprep.subr.bf16.mxu0 0
    %1324 = vmatpush1.bf16.msra.mxu0 %v331
    %1325 = vmatprep.subr.bf16.mxu0 0
    %1326 = vmatpush1.bf16.msra.mxu0 %v330
    %1327 = vmatprep.subr.bf16.mxu0 0
    %1328 = vmatpush1.bf16.msra.mxu0 %v329
    %1329 = vmatprep.subr.bf16.mxu0 0
    %1330 = vmatpush1.bf16.msra.mxu0 %v328
    %1331 = vmatprep.subr.bf16.mxu0 0
    %1332 = vmatpush2.bf16.msra.mxu0 0
    %1333 = vmatprep.subr.bf16.mxu0 0
    %1334 = vmatpush2.bf16.msra.mxu0 0
    %1335 = vmatprep.subr.bf16.mxu0 0
    %1336 = vmatpush2.bf16.msra.mxu0 0
    %1337 = vmatprep.subr.bf16.mxu0 0
    %1338 = vmatpush2.bf16.msra.mxu0 0
    %1339 = vmatprep.subr.bf16.mxu0 0
    %1340 = vmatpush2.bf16.msra.mxu0 0
    %1341 = vmatprep.subr.bf16.mxu0 0
    %1342 = vmatpush2.bf16.msra.mxu0 0
    %1343 = vmatprep.subr.bf16.mxu0 0
    %1344 = vmatpush2.bf16.msra.mxu0 0
    %1345 = vmatprep.subr.bf16.mxu0 0
    %1346 = vmatpush2.bf16.msra.mxu0 0
    %1347 = vmatprep.mubr.bf16.mxu0 0
    %1348 = vmatmul.mubr.bf16.gmra.mxu0 %v1314
    %v1349 = vpop.f32.mrf.mxu0
    %v1350 = vadd.f32 %v293, %v1349
    %v1351 = vpop.f32.mrf.mxu0
    %v1352 = vpop.f32.mrf.mxu0
    %v1353 = vpop.f32.mrf.mxu0
    %1354 = vdwg.mxu0
    %1355 = vmatprep.subr.bf16.mxu0 0
    %1356 = vmatpush1.bf16.msra.mxu0 %v423
    %1357 = vmatprep.subr.bf16.mxu0 0
    %1358 = vmatpush1.bf16.msra.mxu0 %v422
    %1359 = vmatprep.subr.bf16.mxu0 0
    %1360 = vmatpush1.bf16.msra.mxu0 %v421
    %1361 = vmatprep.subr.bf16.mxu0 0
    %1362 = vmatpush1.bf16.msra.mxu0 %v420
    %1363 = vmatprep.subr.bf16.mxu0 0
    %1364 = vmatpush1.bf16.msra.mxu0 %v419
    %1365 = vmatprep.subr.bf16.mxu0 0
    %1366 = vmatpush1.bf16.msra.mxu0 %v418
    %1367 = vmatprep.subr.bf16.mxu0 0
    %1368 = vmatpush1.bf16.msra.mxu0 %v417
    %1369 = vmatprep.subr.bf16.mxu0 0
    %1370 = vmatpush1.bf16.msra.mxu0 %v416
    %1371 = vmatprep.subr.bf16.mxu0 0
    %1372 = vmatpush2.bf16.msra.mxu0 0
    %1373 = vmatprep.subr.bf16.mxu0 0
    %1374 = vmatpush2.bf16.msra.mxu0 0
    %1375 = vmatprep.subr.bf16.mxu0 0
    %1376 = vmatpush2.bf16.msra.mxu0 0
    %1377 = vmatprep.subr.bf16.mxu0 0
    %1378 = vmatpush2.bf16.msra.mxu0 0
    %1379 = vmatprep.subr.bf16.mxu0 0
    %1380 = vmatpush2.bf16.msra.mxu0 0
    %1381 = vmatprep.subr.bf16.mxu0 0
    %1382 = vmatpush2.bf16.msra.mxu0 0
    %1383 = vmatprep.subr.bf16.mxu0 0
    %1384 = vmatpush2.bf16.msra.mxu0 0
    %1385 = vmatprep.subr.bf16.mxu0 0
    %1386 = vmatpush2.bf16.msra.mxu0 0
    %1387 = vmatprep.mubr.bf16.mxu0 0
    %1388 = vmatmul.mubr.bf16.gmra.mxu0 %v1272
    %v1389 = vpop.f32.mrf.mxu0
    %v1390 = vadd.f32 0.0, %v1389
    %v1391 = vpop.f32.mrf.mxu0
    %v1392 = vpop.f32.mrf.mxu0
    %v1393 = vpop.f32.mrf.mxu0
    %1394 = vdwg.mxu0
    %v1395 = vadd.f32 %v221, %v1390
    %v1396 = vtanh.pop %v1395
    %v1397 = vpack.c.bf16 %v1396, %v1396
    %1398 = vmatprep.subr.bf16.mxu0 0
    %1399 = vmatpush1.bf16.msra.mxu0 %v514
    %1400 = vmatprep.subr.bf16.mxu0 0
    %1401 = vmatpush1.bf16.msra.mxu0 %v513
    %1402 = vmatprep.subr.bf16.mxu0 0
    %1403 = vmatpush1.bf16.msra.mxu0 %v512
    %1404 = vmatprep.subr.bf16.mxu0 0
    %1405 = vmatpush1.bf16.msra.mxu0 %v511
    %1406 = vmatprep.subr.bf16.mxu0 0
    %1407 = vmatpush1.bf16.msra.mxu0 %v510
    %1408 = vmatprep.subr.bf16.mxu0 0
    %1409 = vmatpush1.bf16.msra.mxu0 %v509
    %1410 = vmatprep.subr.bf16.mxu0 0
    %1411 = vmatpush1.bf16.msra.mxu0 %v508
    %1412 = vmatprep.subr.bf16.mxu0 0
    %1413 = vmatpush1.bf16.msra.mxu0 %v507
    %1414 = vmatprep.subr.bf16.mxu0 0
    %1415 = vmatpush2.bf16.msra.mxu0 0
    %1416 = vmatprep.subr.bf16.mxu0 0
    %1417 = vmatpush2.bf16.msra.mxu0 0
    %1418 = vmatprep.subr.bf16.mxu0 0
    %1419 = vmatpush2.bf16.msra.mxu0 0
    %1420 = vmatprep.subr.bf16.mxu0 0
    %1421 = vmatpush2.bf16.msra.mxu0 0
    %1422 = vmatprep.subr.bf16.mxu0 0
    %1423 = vmatpush2.bf16.msra.mxu0 0
    %1424 = vmatprep.subr.bf16.mxu0 0
    %1425 = vmatpush2.bf16.msra.mxu0 0
    %1426 = vmatprep.subr.bf16.mxu0 0
    %1427 = vmatpush2.bf16.msra.mxu0 0
    %1428 = vmatprep.subr.bf16.mxu0 0
    %1429 = vmatpush2.bf16.msra.mxu0 0
    %1430 = vmatprep.mubr.bf16.mxu0 0
    %1431 = vmatmul.mubr.bf16.gmra.mxu0 %v1397
    %v1432 = vpop.f32.mrf.mxu0
    %v1433 = vadd.f32 %v1350, %v1432
    %v1434 = vpop.f32.mrf.mxu0
    %v1435 = vpop.f32.mrf.mxu0
    %v1436 = vpop.f32.mrf.mxu0
    %1437 = vdwg.mxu0
    %v1438 = vtanh.pop %v1433
    %v1439 = vpack.c.bf16 %v1438, %v1438
    %v1441 = vlaneseq
    %v1442 = vshrl.u32 %v1441, 7
    %v1443 = vsub.s32 0, %v1442
    %v1444 = vrot.slane %v295, %v1443
    %v1462 = vunpack.c.l.b16 %v272
    %v1463 = vunpack.c.l.b16 %v273
    %v1464 = vunpack.c.l.b16 %v274
    %v1465 = vunpack.c.l.b16 %v275
    %v1466 = vunpack.c.l.b16 %v276
    %v1467 = vunpack.c.l.b16 %v277
    %v1468 = vunpack.c.l.b16 %v278
    %v1469 = vunpack.c.l.b16 %v279
    %v1470 = vunpack.c.l.b16 %v280
    %v1471 = vunpack.c.l.b16 %v281
    %v1472 = vunpack.c.l.b16 %v282
    %v1473 = vunpack.c.l.b16 %v283
    %v1474 = vunpack.c.l.b16 %v284
    %v1475 = vunpack.c.l.b16 %v285
    %v1476 = vunpack.c.l.b16 %v286
    %v1477 = vunpack.c.l.b16 %v287
    %v1478 = vpack.c.b16 %v1463, %v1462
    %v1479 = vpack.c.b16 %v1465, %v1464
    %v1480 = vpack.c.b16 %v1467, %v1466
    %v1481 = vpack.c.b16 %v1469, %v1468
    %v1482 = vpack.c.b16 %v1471, %v1470
    %v1483 = vpack.c.b16 %v1473, %v1472
    %v1484 = vpack.c.b16 %v1475, %v1474
    %v1485 = vpack.c.b16 %v1477, %v1476
    %1494 = vmatprep.subr.bf16.mxu0 0
    %1495 = vmatpush1.bf16.msra.mxu0 %v1485
    %1496 = vmatprep.subr.bf16.mxu0 0
    %1497 = vmatpush1.bf16.msra.mxu0 %v1484
    %1498 = vmatprep.subr.bf16.mxu0 0
    %1499 = vmatpush1.bf16.msra.mxu0 %v1483
    %1500 = vmatprep.subr.bf16.mxu0 0
    %1501 = vmatpush1.bf16.msra.mxu0 %v1482
    %1502 = vmatprep.subr.bf16.mxu0 0
    %1503 = vmatpush1.bf16.msra.mxu0 %v1481
    %1504 = vmatprep.subr.bf16.mxu0 0
    %1505 = vmatpush1.bf16.msra.mxu0 %v1480
    %1506 = vmatprep.subr.bf16.mxu0 0
    %1507 = vmatpush1.bf16.msra.mxu0 %v1479
    %1508 = vmatprep.subr.bf16.mxu0 0
    %1509 = vmatpush1.bf16.msra.mxu0 %v1478
    %1510 = vmatprep.subr.bf16.mxu0 0
    %1511 = vmatpush2.bf16.msra.mxu0 0
    %1512 = vmatprep.subr.bf16.mxu0 0
    %1513 = vmatpush2.bf16.msra.mxu0 0
    %1514 = vmatprep.subr.bf16.mxu0 0
    %1515 = vmatpush2.bf16.msra.mxu0 0
    %1516 = vmatprep.subr.bf16.mxu0 0
    %1517 = vmatpush2.bf16.msra.mxu0 0
    %1518 = vmatprep.subr.bf16.mxu0 0
    %1519 = vmatpush2.bf16.msra.mxu0 0
    %1520 = vmatprep.subr.bf16.mxu0 0
    %1521 = vmatpush2.bf16.msra.mxu0 0
    %1522 = vmatprep.subr.bf16.mxu0 0
    %1523 = vmatpush2.bf16.msra.mxu0 0
    %1524 = vmatprep.subr.bf16.mxu0 0
    %1525 = vmatpush2.bf16.msra.mxu0 0
    %1526 = vmatprep.mubr.bf16.mxu0 0
    %1527 = vmatmul.mubr.bf16.gmra.mxu0 %v1439
    %v1528 = vpop.f32.mrf.mxu0
    %v1529 = vadd.f32 %v1444, %v1528
    %v1530 = vpop.f32.mrf.mxu0
    %v1531 = vpop.f32.mrf.mxu0
    %v1532 = vpop.f32.mrf.mxu0
    %1533 = vdwg.mxu0
    %1534 = vst [vmem:[%s4] sm:$0xff] %v1529
    // Predicated region
    $region22: #{torch_rnn_forward.1} parent=1 // pred_check
      _
    $region23: #{torch_rnn_forward.1} parent=1 // pred_check_branch
      %1536 = sbr.rel (0) target = $region25
    $region24: #{torch_rnn_forward.1} parent=1 // pred_region
      _
    $region25: #{torch_rnn_forward.1} parent=1 // pred_fallthru
      _
    // Predicated region
    $region26: #{torch_rnn_forward.1} parent=1 // pred_check
      _
    $region27: #{torch_rnn_forward.1} parent=1 // pred_check_branch
      %1538 = sbr.rel (0) target = $region29
    $region28: #{torch_rnn_forward.1} parent=1 // pred_region
      _
    $region29: #{torch_rnn_forward.1} parent=1 // pred_fallthru
      _
    %1539 = vsyncpa [#allocation3], 1

</llo_original>
